<compile_context>
chip_gen: v7x
topology: tpu7x:2x2x1
jax: 0.10.0
libtpu: 0.0.40
codegen_flags: <defaults>
</compile_context>

<pallas_src>
import math

import jax
import jax.numpy as jnp
from jax.experimental import pallas as pl
from jax.experimental.pallas import tpu as pltpu

_SQRT_HALF = 0.7071067811865476
_GELU_C = 0.7978845608028654  # sqrt(2 / pi)


def _gelu(x):
    # tanh-approximate GELU: tanh lowers to the EUP (its own VLIW slot), leaving
    # the VALU free for the surrounding elementwise work.
    return 0.5 * x * (1.0 + jnp.tanh(_GELU_C * (x + 0.044715 * (x * x * x))))


def _fp_kernel(xyz1_ref, xyz2_ref, p1_ref, p2_ref,
               wf1_ref, wf2_ref, bf_ref,
               w1_ref, b1_ref, w2_ref, b2_ref,
               out_ref):
    x1 = xyz1_ref[0]                      # [TN, 3]  f32
    x2 = xyz2_ref[0]                      # [S, 3]   f32
    p1 = p1_ref[0]                        # [TN, D1] bf16
    p2 = p2_ref[0]                        # [S, D2]  bf16
    tn = x1.shape[0]
    s = x2.shape[0]

    # squared pairwise distances: d[i, j] = ||x1[i] - x2[j]||^2
    # -2 is folded into the tiny [TN, 3] operand; clamp at 0 for robustness
    # against f32 cancellation (matches exact math; PyTorch can go ~-1e-6).
    dn = (((1,), (1,)), ((), ()))         # contract the channel (=3) axis
    cross = jax.lax.dot_general(-2.0 * x1, x2, dn,
                                preferred_element_type=jnp.float32)        # [TN, S]
    s2 = jax.lax.dot_general(jnp.ones((1, 3), jnp.float32), x2 * x2, dn,
                             preferred_element_type=jnp.float32)           # [1, S]
    s1 = jnp.sum(x1 * x1, axis=-1, keepdims=True)                          # [TN, 1]
    d = jnp.maximum(cross + s1 + s2, 0.0)                                  # [TN, S]

    # 3-NN inverse-distance weights.  Instead of gathering points2 with int
    # indices, build a dense [TN, S] weight matrix (3 one-hot rows scaled by the
    # reciprocal distances) so the interpolation is one MXU matmul.
    col = jax.lax.broadcasted_iota(jnp.int32, (tn, s), 1)
    w_full = jnp.zeros((tn, s), jnp.float32)
    recip_sum = jnp.zeros((tn, 1), jnp.float32)
    dw = d
    for _ in range(3):                                   # static unroll, top-3
        dmin = jnp.min(dw, axis=-1, keepdims=True)                         # [TN, 1]
        # stable tie-break: lowest column index among equal minima (== torch.sort)
        first = jnp.min(jnp.where(dw == dmin, col, s), axis=-1, keepdims=True)
        sel = col == first                                                 # one-hot
        r = 1.0 / (dmin + 1e-8)
        w_full = w_full + jnp.where(sel, r, 0.0)
        recip_sum = recip_sum + r
        dw = jnp.where(sel, jnp.inf, dw)

    # Interpolate with the *unnormalized* weights on the MXU (bf16 operands,
    # f32 accumulate), then rescale by 1/recip_sum with an EUP approximate
    # reciprocal — avoids a full [TN, S] VALU divide.
    interp = jnp.dot(w_full.astype(jnp.bfloat16), p2,
                     preferred_element_type=jnp.float32)                   # [TN, D2]
    interp = interp * pl.reciprocal(recip_sum, approx=True)

    # fuse = Conv1d(1x1) + BN + GELU on concat([points1, interp], channel axis).
    # The concat is avoided by splitting the fuse weight into its two channel
    # blocks: concat(p1, interp) @ Wf == p1 @ Wf1 + interp @ Wf2.
    h1 = _gelu(jnp.dot(p1, wf1_ref[...],
                       preferred_element_type=jnp.float32)
               + jnp.dot(interp.astype(jnp.bfloat16), wf2_ref[...],
                         preferred_element_type=jnp.float32)
               + bf_ref[...])                                              # [TN, C_PAD]

    # extraction = ConvBNReLURes1D(groups=1, res_expansion=1.0):
    #   gelu( BN(Conv(gelu(BN(Conv(x))))) + x )
    h2 = _gelu(jnp.dot(h1.astype(jnp.bfloat16), w1_ref[...],
                       preferred_element_type=jnp.float32) + b1_ref[...])
    h3 = jnp.dot(h2.astype(jnp.bfloat16), w2_ref[...],
                 preferred_element_type=jnp.float32) + b2_ref[...]
    out_ref[0] = _gelu(h3 + h1).astype(out_ref.dtype)


def _round_up(x, m):
    return (x + m - 1) // m * m


def _vmem_bytes(tn, s, d1, d2, c_pad, m_pad):
    """Rough per-grid-step VMEM working-set estimate (bytes)."""
    f32, bf16 = 4, 2
    # double-buffered pipeline blocks: xyz1 (f32) / points1 (bf16) / out (f32) tiles
    dma = 2 * tn * (f32 * 3 + bf16 * d1 + f32 * c_pad)
    # resident xyz2 (f32) / points2 (bf16)
    dma += 2 * s * (f32 * 3 + bf16 * d2)
    # weights (bf16) + biases (f32), double-buffered
    dma += 2 * (bf16 * ((d1 + d2) * c_pad + 2 * c_pad * m_pad) + f32 * (2 * c_pad + m_pad))
    # live in-kernel temporaries: ~5x [tn, s] (d/dw, col, w_full, masks) + activations
    live = f32 * tn * (5 * s + 2 * (c_pad + m_pad) + 2 * d2)
    return dma + live


def _pick_tile_n(n, s, d1, d2, c_pad, m_pad, budget_bytes=26 << 20):
    # Sized so the working set fits v7x's 32 MiB default scoped-VMEM limit
    # (64 MiB physical); comfortably within v5e/v6e budgets too.
    for tn in (512, 256, 128, 64, 32, 16, 8):
        if n % tn == 0 and _vmem_bytes(tn, s, d1, d2, c_pad, m_pad) <= budget_bytes:
            return tn
    return 8 if n % 8 == 0 else n


def pointnet_feature_propagation(xyz1, xyz2, points1, points2, params):
    B, N, _ = xyz1.shape
    S = xyz2.shape[1]

    if S == 1:
        # PyTorch's S == 1 branch (points2.repeat(1, N, 1)) is equivalent to
        # 3-NN interpolation among replicas of the single sampled point.
        xyz2 = jnp.tile(xyz2, (1, 4, 1))
        points2 = jnp.tile(points2, (1, 4, 1))
        S = 4
    if S < 3:
        raise NotImplementedError("3-NN interpolation needs S >= 3 (PyTorch would also fail).")

    D1 = points1.shape[-1]
    D2 = points2.shape[-1]
    wf1, wf2, bf, w1, b1, w2, b2 = params
    c_out = wf1.shape[1]
    c_mid = w1.shape[1]

    # Features are only ever consumed as bf16 MXU operands inside the kernel;
    # casting in the wrapper is numerically identical and halves their HBM
    # traffic.  Positions stay f32 (distance precision).
    points1 = points1.astype(jnp.bfloat16)
    points2 = points2.astype(jnp.bfloat16)
    xyz1 = xyz1.astype(jnp.float32)
    xyz2 = xyz2.astype(jnp.float32)

    # Pad channel dims to 128 lanes: lane-dense MXU matmuls + unmasked output
    # stores.  Zero padding is exact (gelu(0) == 0); sliced off on return.
    c_pad = _round_up(c_out, 128)
    m_pad = _round_up(c_mid, 128)

    def pad_to(a, rows, cols):
        return jnp.pad(a, ((0, rows - a.shape[0]), (0, cols - a.shape[1])))

    wf1p = pad_to(wf1, D1, c_pad).astype(jnp.bfloat16)
    wf2p = pad_to(wf2, D2, c_pad).astype(jnp.bfloat16)
    w1p = pad_to(w1, c_pad, m_pad).astype(jnp.bfloat16)
    w2p = pad_to(w2, m_pad, c_pad).astype(jnp.bfloat16)
    bfp = pad_to(bf, 1, c_pad).astype(jnp.float32)
    b1p = pad_to(b1, 1, m_pad).astype(jnp.float32)
    b2p = pad_to(b2, 1, c_pad).astype(jnp.float32)

    tile_n = _pick_tile_n(N, S, D1, D2, c_pad, m_pad)
    est = _vmem_bytes(tile_n, S, D1, D2, c_pad, m_pad)
    vmem_limit = int(min(48 << 20, max(16 << 20, 2 * est)))  # headroom; <= v7x physical

    grid_spec = pltpu.PrefetchScalarGridSpec(
        num_scalar_prefetch=0,
        grid=(B, N // tile_n),
        in_specs=[
            pl.BlockSpec((1, tile_n, 3), lambda b, n: (b, n, 0)),
            pl.BlockSpec((1, S, 3), lambda b, n: (b, 0, 0)),       # resident across n
            pl.BlockSpec((1, tile_n, D1), lambda b, n: (b, n, 0)),
            pl.BlockSpec((1, S, D2), lambda b, n: (b, 0, 0)),      # resident across n
            pl.BlockSpec((D1, c_pad), lambda b, n: (0, 0)),
            pl.BlockSpec((D2, c_pad), lambda b, n: (0, 0)),
            pl.BlockSpec((1, c_pad), lambda b, n: (0, 0)),
            pl.BlockSpec((c_pad, m_pad), lambda b, n: (0, 0)),
            pl.BlockSpec((1, m_pad), lambda b, n: (0, 0)),
            pl.BlockSpec((m_pad, c_pad), lambda b, n: (0, 0)),
            pl.BlockSpec((1, c_pad), lambda b, n: (0, 0)),
        ],
        out_specs=pl.BlockSpec((1, tile_n, c_pad), lambda b, n: (b, n, 0)),
    )
    out = pl.pallas_call(
        _fp_kernel,
        out_shape=jax.ShapeDtypeStruct((B, N, c_pad), jnp.float32),
        grid_spec=grid_spec,
        compiler_params=pltpu.CompilerParams(
            dimension_semantics=("parallel", "parallel"),
            vmem_limit_bytes=vmem_limit,
        ),
    )(xyz1, xyz2, points1, points2, wf1p, wf2p, bfp, w1p, b1p, w2p, b2p)
    if c_pad == c_out:
        return out
    return out[..., :c_out]


def make_params(key, d1, d2, c_out, res_expansion=1.0):
    """Deterministic Conv1d weights; BatchNorm1d (eval, default stats) folded in."""
    c_in = d1 + d2
    c_mid = int(c_out * res_expansion)
    ks = jax.random.split(key, 3)

    def conv_init(k, o, i):
        kw, kb = jax.random.split(k)
        w = jax.random.normal(kw, (o, i), jnp.float32) * (1.0 / math.sqrt(i))
        b = jax.random.normal(kb, (o,), jnp.float32) * 0.05
        return w, b

    def fold_bn(w, b, eps=1e-5):
        # BN eval mode, default params: gamma=1, beta=0, running_mean=0, running_var=1
        gamma = jnp.ones((w.shape[0],), jnp.float32)
        beta = jnp.zeros_like(gamma)
        rm = jnp.zeros_like(gamma)
        rv = jnp.ones_like(gamma)
        scale = gamma / jnp.sqrt(rv + eps)
        return w * scale[:, None], (b - rm) * scale + beta

    wf, bf = fold_bn(*conv_init(ks[0], c_out, c_in))
    w1, b1 = fold_bn(*conv_init(ks[1], c_mid, c_out))
    w2, b2 = fold_bn(*conv_init(ks[2], c_out, c_mid))
    wf_t = wf.T  # [c_in, c_out], channels-last matmul form
    return (wf_t[:d1], wf_t[d1:], bf[None, :],
            w1.T, b1[None, :], w2.T, b2[None, :])


def reference(xyz1, xyz2, points1, points2, params):
    """Pure-JAX reference mirroring the PyTorch forward (f32, exact erf GELU)."""
    wf1, wf2, bf, w1, b1, w2, b2 = params
    B, N, _ = xyz1.shape
    S = xyz2.shape[1]
    if S == 1:
        interp = jnp.tile(points2, (1, N, 1))
    else:
        d = (jnp.sum(xyz1 ** 2, -1)[:, :, None]
             + jnp.sum(xyz2 ** 2, -1)[:, None, :]
             - 2.0 * jnp.einsum('bnc,bsc->bns', xyz1, xyz2))
        d = jnp.maximum(d, 0.0)
        idx = jnp.argsort(d, axis=-1)[:, :, :3]
        dsel = jnp.take_along_axis(d, idx, axis=-1)
        recip = 1.0 / (dsel + 1e-8)
        w = recip / jnp.sum(recip, -1, keepdims=True)
        gathered = points2[jnp.arange(B)[:, None, None], idx]    # [B, N, 3, D2]
        interp = jnp.sum(gathered * w[..., None], axis=2)
    feat = jnp.concatenate([points1, interp], axis=-1)

    def gelu(x):
        return 0.5 * x * (1.0 + jax.scipy.special.erf(x * _SQRT_HALF))

    wf = jnp.concatenate([wf1, wf2], axis=0)
    h1 = gelu(feat @ wf + bf)
    h2 = gelu(h1 @ w1 + b1)
    h3 = h2 @ w2 + b2
    return gelu(h3 + h1)


if __name__ == "__main__":
    B, N, S, D1, D2, C_OUT = 2, 16, 8, 8, 8, 32
    key = jax.random.PRNGKey(0)
    k1, k2, k3, k4, kp = jax.random.split(key, 5)
    xyz1 = jax.random.normal(k1, (B, N, 3), jnp.float32)
    xyz2 = jax.random.normal(k2, (B, S, 3), jnp.float32)
    points1 = jax.random.normal(k3, (B, N, D1), jnp.float32)
    points2 = jax.random.normal(k4, (B, S, D2), jnp.float32)
    params = make_params(kp, D1, D2, C_OUT)

    out = pointnet_feature_propagation(xyz1, xyz2, points1, points2, params)
    out = jax.block_until_ready(out)

    ref = reference(xyz1, xyz2, points1, points2, params)
    assert out.shape == (B, N, C_OUT)
    err = float(jnp.max(jnp.abs(out - ref)))
    # Tolerance budgets for the kernel's bf16 MXU matmuls and tanh-approximate
    # GELU versus the exact f32 / erf reference (expected max err ~1e-2).
    assert jnp.allclose(out, ref, atol=5e-2, rtol=5e-2), f"max abs err {err}"
    print("KERNEL_OK")
</pallas_src>

<mosaic_0001>
module attributes {stable_mosaic.version = 11 : i64} {
  func.func @_fp_kernel(%arg0: i32, %arg1: i32, %arg2: memref<1x16x3xf32, #tpu.memory_space<vmem>>, %arg3: memref<1x8x3xf32, #tpu.memory_space<vmem>>, %arg4: memref<1x16x8xbf16, #tpu.memory_space<vmem>>, %arg5: memref<1x8x8xbf16, #tpu.memory_space<vmem>>, %arg6: memref<8x128xbf16, #tpu.memory_space<vmem>>, %arg7: memref<8x128xbf16, #tpu.memory_space<vmem>>, %arg8: memref<1x128xf32, #tpu.memory_space<vmem>>, %arg9: memref<128x128xbf16, #tpu.memory_space<vmem>>, %arg10: memref<1x128xf32, #tpu.memory_space<vmem>>, %arg11: memref<128x128xbf16, #tpu.memory_space<vmem>>, %arg12: memref<1x128xf32, #tpu.memory_space<vmem>>, %arg13: memref<1x16x128xf32, #tpu.memory_space<vmem>>) attributes {dimension_semantics = [#tpu.dimension_semantics<parallel>, #tpu.dimension_semantics<parallel>], iteration_bounds = array<i64: 2, 1>, scalar_prefetch = 0 : i64, scratch_operands = 0 : i64, tpu.core_type = #tpu.core_type<tc>, window_params = [{transform_indices = @transform_0, window_bounds = array<i64: 1, 16, 3>}, {transform_indices = @transform_1, window_bounds = array<i64: 1, 8, 3>}, {transform_indices = @transform_2, window_bounds = array<i64: 1, 16, 8>}, {transform_indices = @transform_3, window_bounds = array<i64: 1, 8, 8>}, {pipeline_mode = #tpu.pipeline_mode<synchronous>, transform_indices = @transform_4, window_bounds = array<i64: 8, 128>}, {pipeline_mode = #tpu.pipeline_mode<synchronous>, transform_indices = @transform_5, window_bounds = array<i64: 8, 128>}, {pipeline_mode = #tpu.pipeline_mode<synchronous>, transform_indices = @transform_6, window_bounds = array<i64: 1, 128>}, {pipeline_mode = #tpu.pipeline_mode<synchronous>, transform_indices = @transform_7, window_bounds = array<i64: 128, 128>}, {pipeline_mode = #tpu.pipeline_mode<synchronous>, transform_indices = @transform_8, window_bounds = array<i64: 1, 128>}, {pipeline_mode = #tpu.pipeline_mode<synchronous>, transform_indices = @transform_9, window_bounds = array<i64: 128, 128>}, {pipeline_mode = #tpu.pipeline_mode<synchronous>, transform_indices = @transform_10, window_bounds = array<i64: 1, 128>}, {transform_indices = @transform_11, window_bounds = array<i64: 1, 16, 128>}]} {
    %c0 = arith.constant 0 : index
    %c0_0 = arith.constant 0 : index
    %c0_1 = arith.constant 0 : index
    %0 = vector.load %arg2[%c0, %c0_0, %c0_1] : memref<1x16x3xf32, #tpu.memory_space<vmem>>, vector<1x16x3xf32>
    %1 = vector.shape_cast %0 : vector<1x16x3xf32> to vector<16x3xf32>
    %c0_2 = arith.constant 0 : index
    %c0_3 = arith.constant 0 : index
    %c0_4 = arith.constant 0 : index
    %2 = vector.load %arg3[%c0_2, %c0_3, %c0_4] : memref<1x8x3xf32, #tpu.memory_space<vmem>>, vector<1x8x3xf32>
    %3 = vector.shape_cast %2 : vector<1x8x3xf32> to vector<8x3xf32>
    %c0_5 = arith.constant 0 : index
    %c0_6 = arith.constant 0 : index
    %c0_7 = arith.constant 0 : index
    %4 = vector.load %arg4[%c0_5, %c0_6, %c0_7] : memref<1x16x8xbf16, #tpu.memory_space<vmem>>, vector<1x16x8xbf16>
    %5 = vector.shape_cast %4 : vector<1x16x8xbf16> to vector<16x8xbf16>
    %c0_8 = arith.constant 0 : index
    %c0_9 = arith.constant 0 : index
    %c0_10 = arith.constant 0 : index
    %6 = vector.load %arg5[%c0_8, %c0_9, %c0_10] : memref<1x8x8xbf16, #tpu.memory_space<vmem>>, vector<1x8x8xbf16>
    %7 = vector.shape_cast %6 : vector<1x8x8xbf16> to vector<8x8xbf16>
    %cst = arith.constant -2.000000e+00 : f32
    %8 = vector.broadcast %cst : f32 to vector<16x3xf32>
    %9 = arith.mulf %8, %1 : vector<16x3xf32>
    %cst_11 = arith.constant dense<0.000000e+00> : vector<16x8xf32>
    %10 = tpu.matmul %9, %3, %cst_11 {dimension_numbers = #tpu.dot_dimension_numbers<[1], [1], [0], [0], [0, 0, 1, 0], [], []>} : vector<16x3xf32>, vector<8x3xf32>, vector<16x8xf32> -> vector<16x8xf32>
    %cst_12 = arith.constant 1.000000e+00 : f32
    %11 = vector.broadcast %cst_12 : f32 to vector<1x3xf32>
    %12 = arith.mulf %3, %3 : vector<8x3xf32>
    %cst_13 = arith.constant dense<0.000000e+00> : vector<1x8xf32>
    %13 = tpu.matmul %11, %12, %cst_13 {dimension_numbers = #tpu.dot_dimension_numbers<[1], [1], [0], [0], [0, 0, 1, 0], [], []>} : vector<1x3xf32>, vector<8x3xf32>, vector<1x8xf32> -> vector<1x8xf32>
    %14 = arith.mulf %1, %1 : vector<16x3xf32>
    %cst_14 = arith.constant dense<0.000000e+00> : vector<16xf32>
    %15 = vector.multi_reduction <add>, %14, %cst_14 [1] : vector<16x3xf32> to vector<16xf32>
    %16 = vector.shape_cast %15 : vector<16xf32> to vector<16x1xf32>
    %17 = vector.broadcast %16 : vector<16x1xf32> to vector<16x8xf32>
    %18 = arith.addf %10, %17 : vector<16x8xf32>
    %19 = vector.broadcast %13 : vector<1x8xf32> to vector<16x8xf32>
    %20 = arith.addf %18, %19 : vector<16x8xf32>
    %cst_15 = arith.constant 0.000000e+00 : f32
    %21 = vector.broadcast %cst_15 : f32 to vector<16x8xf32>
    %22 = arith.maximumf %20, %21 : vector<16x8xf32>
    %23 = tpu.iota {dimensions = array<i32: 1>} : vector<16x8xi32>
    %cst_16 = arith.constant 0.000000e+00 : f32
    %24 = vector.broadcast %cst_16 : f32 to vector<16x8xf32>
    %cst_17 = arith.constant 0.000000e+00 : f32
    %25 = vector.broadcast %cst_17 : f32 to vector<16x1xf32>
    %cst_18 = arith.constant dense<0x7F800000> : vector<16xf32>
    %26 = vector.multi_reduction <minimumf>, %22, %cst_18 [1] : vector<16x8xf32> to vector<16xf32>
    %27 = vector.shape_cast %26 : vector<16xf32> to vector<16x1xf32>
    %28 = vector.broadcast %27 : vector<16x1xf32> to vector<16x8xf32>
    %29 = arith.cmpf oeq, %22, %28 : vector<16x8xf32>
    %c8_i32 = arith.constant 8 : i32
    %30 = vector.broadcast %c8_i32 : i32 to vector<16x8xi32>
    %31 = arith.select %29, %23, %30 : vector<16x8xi1>, vector<16x8xi32>
    %cst_19 = arith.constant dense<2147483647> : vector<16xi32>
    %32 = vector.multi_reduction <minsi>, %31, %cst_19 [1] : vector<16x8xi32> to vector<16xi32>
    %33 = vector.shape_cast %32 : vector<16xi32> to vector<16x1xi32>
    %34 = vector.broadcast %33 : vector<16x1xi32> to vector<16x8xi32>
    %35 = arith.cmpi eq, %23, %34 : vector<16x8xi32>
    %cst_20 = arith.constant 9.99999993E-9 : f32
    %36 = vector.broadcast %cst_20 : f32 to vector<16x1xf32>
    %37 = arith.addf %27, %36 : vector<16x1xf32>
    %cst_21 = arith.constant 1.000000e+00 : f32
    %38 = vector.broadcast %cst_21 : f32 to vector<16x1xf32>
    %39 = arith.divf %38, %37 : vector<16x1xf32>
    %cst_22 = arith.constant 0.000000e+00 : f32
    %40 = vector.shape_cast %39 : vector<16x1xf32> to vector<16x1xf32>
    %41 = vector.broadcast %40 : vector<16x1xf32> to vector<16x8xf32>
    %42 = vector.broadcast %cst_22 : f32 to vector<16x8xf32>
    %43 = arith.select %35, %41, %42 : vector<16x8xi1>, vector<16x8xf32>
    %44 = arith.addf %24, %43 : vector<16x8xf32>
    %45 = arith.addf %25, %39 : vector<16x1xf32>
    %cst_23 = arith.constant 0x7F800000 : f32
    %46 = vector.broadcast %cst_23 : f32 to vector<16x8xf32>
    %47 = arith.select %35, %46, %22 : vector<16x8xi1>, vector<16x8xf32>
    %cst_24 = arith.constant dense<0x7F800000> : vector<16xf32>
    %48 = vector.multi_reduction <minimumf>, %47, %cst_24 [1] : vector<16x8xf32> to vector<16xf32>
    %49 = vector.shape_cast %48 : vector<16xf32> to vector<16x1xf32>
    %50 = vector.broadcast %49 : vector<16x1xf32> to vector<16x8xf32>
    %51 = arith.cmpf oeq, %47, %50 : vector<16x8xf32>
    %c8_i32_25 = arith.constant 8 : i32
    %52 = vector.broadcast %c8_i32_25 : i32 to vector<16x8xi32>
    %53 = arith.select %51, %23, %52 : vector<16x8xi1>, vector<16x8xi32>
    %cst_26 = arith.constant dense<2147483647> : vector<16xi32>
    %54 = vector.multi_reduction <minsi>, %53, %cst_26 [1] : vector<16x8xi32> to vector<16xi32>
    %55 = vector.shape_cast %54 : vector<16xi32> to vector<16x1xi32>
    %56 = vector.broadcast %55 : vector<16x1xi32> to vector<16x8xi32>
    %57 = arith.cmpi eq, %23, %56 : vector<16x8xi32>
    %cst_27 = arith.constant 9.99999993E-9 : f32
    %58 = vector.broadcast %cst_27 : f32 to vector<16x1xf32>
    %59 = arith.addf %49, %58 : vector<16x1xf32>
    %cst_28 = arith.constant 1.000000e+00 : f32
    %60 = vector.broadcast %cst_28 : f32 to vector<16x1xf32>
    %61 = arith.divf %60, %59 : vector<16x1xf32>
    %cst_29 = arith.constant 0.000000e+00 : f32
    %62 = vector.shape_cast %61 : vector<16x1xf32> to vector<16x1xf32>
    %63 = vector.broadcast %62 : vector<16x1xf32> to vector<16x8xf32>
    %64 = vector.broadcast %cst_29 : f32 to vector<16x8xf32>
    %65 = arith.select %57, %63, %64 : vector<16x8xi1>, vector<16x8xf32>
    %66 = arith.addf %44, %65 : vector<16x8xf32>
    %67 = arith.addf %45, %61 : vector<16x1xf32>
    %cst_30 = arith.constant 0x7F800000 : f32
    %68 = vector.broadcast %cst_30 : f32 to vector<16x8xf32>
    %69 = arith.select %57, %68, %47 : vector<16x8xi1>, vector<16x8xf32>
    %cst_31 = arith.constant dense<0x7F800000> : vector<16xf32>
    %70 = vector.multi_reduction <minimumf>, %69, %cst_31 [1] : vector<16x8xf32> to vector<16xf32>
    %71 = vector.shape_cast %70 : vector<16xf32> to vector<16x1xf32>
    %72 = vector.broadcast %71 : vector<16x1xf32> to vector<16x8xf32>
    %73 = arith.cmpf oeq, %69, %72 : vector<16x8xf32>
    %c8_i32_32 = arith.constant 8 : i32
    %74 = vector.broadcast %c8_i32_32 : i32 to vector<16x8xi32>
    %75 = arith.select %73, %23, %74 : vector<16x8xi1>, vector<16x8xi32>
    %cst_33 = arith.constant dense<2147483647> : vector<16xi32>
    %76 = vector.multi_reduction <minsi>, %75, %cst_33 [1] : vector<16x8xi32> to vector<16xi32>
    %77 = vector.shape_cast %76 : vector<16xi32> to vector<16x1xi32>
    %78 = vector.broadcast %77 : vector<16x1xi32> to vector<16x8xi32>
    %79 = arith.cmpi eq, %23, %78 : vector<16x8xi32>
    %cst_34 = arith.constant 9.99999993E-9 : f32
    %80 = vector.broadcast %cst_34 : f32 to vector<16x1xf32>
    %81 = arith.addf %71, %80 : vector<16x1xf32>
    %cst_35 = arith.constant 1.000000e+00 : f32
    %82 = vector.broadcast %cst_35 : f32 to vector<16x1xf32>
    %83 = arith.divf %82, %81 : vector<16x1xf32>
    %cst_36 = arith.constant 0.000000e+00 : f32
    %84 = vector.shape_cast %83 : vector<16x1xf32> to vector<16x1xf32>
    %85 = vector.broadcast %84 : vector<16x1xf32> to vector<16x8xf32>
    %86 = vector.broadcast %cst_36 : f32 to vector<16x8xf32>
    %87 = arith.select %79, %85, %86 : vector<16x8xi1>, vector<16x8xf32>
    %88 = arith.addf %66, %87 : vector<16x8xf32>
    %89 = arith.addf %67, %83 : vector<16x1xf32>
    %90 = arith.truncf %88 : vector<16x8xf32> to vector<16x8xbf16>
    %cst_37 = arith.constant dense<0.000000e+00> : vector<16x8xf32>
    %91 = tpu.matmul %90, %7, %cst_37 {dimension_numbers = #tpu.dot_dimension_numbers<[1], [0], [0], [1], [0, 0, 1, 1], [], []>} : vector<16x8xbf16>, vector<8x8xbf16>, vector<16x8xf32> -> vector<16x8xf32>
    %92 = tpu.reciprocal %89 {approx = true} : vector<16x1xf32> -> vector<16x1xf32>
    %93 = vector.broadcast %92 : vector<16x1xf32> to vector<16x8xf32>
    %94 = arith.mulf %91, %93 : vector<16x8xf32>
    %c0_38 = arith.constant 0 : index
    %c0_39 = arith.constant 0 : index
    %95 = vector.load %arg6[%c0_38, %c0_39] : memref<8x128xbf16, #tpu.memory_space<vmem>>, vector<8x128xbf16>
    %cst_40 = arith.constant dense<0.000000e+00> : vector<16x128xf32>
    %96 = tpu.matmul %5, %95, %cst_40 {dimension_numbers = #tpu.dot_dimension_numbers<[1], [0], [0], [1], [0, 0, 1, 1], [], []>} : vector<16x8xbf16>, vector<8x128xbf16>, vector<16x128xf32> -> vector<16x128xf32>
    %97 = arith.truncf %94 : vector<16x8xf32> to vector<16x8xbf16>
    %c0_41 = arith.constant 0 : index
    %c0_42 = arith.constant 0 : index
    %98 = vector.load %arg7[%c0_41, %c0_42] : memref<8x128xbf16, #tpu.memory_space<vmem>>, vector<8x128xbf16>
    %cst_43 = arith.constant dense<0.000000e+00> : vector<16x128xf32>
    %99 = tpu.matmul %97, %98, %cst_43 {dimension_numbers = #tpu.dot_dimension_numbers<[1], [0], [0], [1], [0, 0, 1, 1], [], []>} : vector<16x8xbf16>, vector<8x128xbf16>, vector<16x128xf32> -> vector<16x128xf32>
    %100 = arith.addf %96, %99 : vector<16x128xf32>
    %c0_44 = arith.constant 0 : index
    %c0_45 = arith.constant 0 : index
    %101 = vector.load %arg8[%c0_44, %c0_45] : memref<1x128xf32, #tpu.memory_space<vmem>>, vector<1x128xf32>
    %102 = vector.broadcast %101 : vector<1x128xf32> to vector<16x128xf32>
    %103 = arith.addf %100, %102 : vector<16x128xf32>
    %cst_46 = arith.constant 5.000000e-01 : f32
    %104 = vector.broadcast %cst_46 : f32 to vector<16x128xf32>
    %105 = arith.mulf %104, %103 : vector<16x128xf32>
    %106 = arith.mulf %103, %103 : vector<16x128xf32>
    %107 = arith.mulf %106, %103 : vector<16x128xf32>
    %cst_47 = arith.constant 4.471500e-02 : f32
    %108 = vector.broadcast %cst_47 : f32 to vector<16x128xf32>
    %109 = arith.mulf %108, %107 : vector<16x128xf32>
    %110 = arith.addf %103, %109 : vector<16x128xf32>
    %cst_48 = arith.constant 0.797884583 : f32
    %111 = vector.broadcast %cst_48 : f32 to vector<16x128xf32>
    %112 = arith.mulf %111, %110 : vector<16x128xf32>
    %113 = math.tanh %112 : vector<16x128xf32>
    %cst_49 = arith.constant 1.000000e+00 : f32
    %114 = vector.broadcast %cst_49 : f32 to vector<16x128xf32>
    %115 = arith.addf %114, %113 : vector<16x128xf32>
    %116 = arith.mulf %105, %115 : vector<16x128xf32>
    %117 = arith.truncf %116 : vector<16x128xf32> to vector<16x128xbf16>
    %c0_50 = arith.constant 0 : index
    %c0_51 = arith.constant 0 : index
    %118 = vector.load %arg9[%c0_50, %c0_51] : memref<128x128xbf16, #tpu.memory_space<vmem>>, vector<128x128xbf16>
    %cst_52 = arith.constant dense<0.000000e+00> : vector<16x128xf32>
    %119 = tpu.matmul %117, %118, %cst_52 {dimension_numbers = #tpu.dot_dimension_numbers<[1], [0], [0], [1], [0, 0, 1, 1], [], []>} : vector<16x128xbf16>, vector<128x128xbf16>, vector<16x128xf32> -> vector<16x128xf32>
    %c0_53 = arith.constant 0 : index
    %c0_54 = arith.constant 0 : index
    %120 = vector.load %arg10[%c0_53, %c0_54] : memref<1x128xf32, #tpu.memory_space<vmem>>, vector<1x128xf32>
    %121 = vector.broadcast %120 : vector<1x128xf32> to vector<16x128xf32>
    %122 = arith.addf %119, %121 : vector<16x128xf32>
    %cst_55 = arith.constant 5.000000e-01 : f32
    %123 = vector.broadcast %cst_55 : f32 to vector<16x128xf32>
    %124 = arith.mulf %123, %122 : vector<16x128xf32>
    %125 = arith.mulf %122, %122 : vector<16x128xf32>
    %126 = arith.mulf %125, %122 : vector<16x128xf32>
    %cst_56 = arith.constant 4.471500e-02 : f32
    %127 = vector.broadcast %cst_56 : f32 to vector<16x128xf32>
    %128 = arith.mulf %127, %126 : vector<16x128xf32>
    %129 = arith.addf %122, %128 : vector<16x128xf32>
    %cst_57 = arith.constant 0.797884583 : f32
    %130 = vector.broadcast %cst_57 : f32 to vector<16x128xf32>
    %131 = arith.mulf %130, %129 : vector<16x128xf32>
    %132 = math.tanh %131 : vector<16x128xf32>
    %cst_58 = arith.constant 1.000000e+00 : f32
    %133 = vector.broadcast %cst_58 : f32 to vector<16x128xf32>
    %134 = arith.addf %133, %132 : vector<16x128xf32>
    %135 = arith.mulf %124, %134 : vector<16x128xf32>
    %136 = arith.truncf %135 : vector<16x128xf32> to vector<16x128xbf16>
    %c0_59 = arith.constant 0 : index
    %c0_60 = arith.constant 0 : index
    %137 = vector.load %arg11[%c0_59, %c0_60] : memref<128x128xbf16, #tpu.memory_space<vmem>>, vector<128x128xbf16>
    %cst_61 = arith.constant dense<0.000000e+00> : vector<16x128xf32>
    %138 = tpu.matmul %136, %137, %cst_61 {dimension_numbers = #tpu.dot_dimension_numbers<[1], [0], [0], [1], [0, 0, 1, 1], [], []>} : vector<16x128xbf16>, vector<128x128xbf16>, vector<16x128xf32> -> vector<16x128xf32>
    %c0_62 = arith.constant 0 : index
    %c0_63 = arith.constant 0 : index
    %139 = vector.load %arg12[%c0_62, %c0_63] : memref<1x128xf32, #tpu.memory_space<vmem>>, vector<1x128xf32>
    %140 = vector.broadcast %139 : vector<1x128xf32> to vector<16x128xf32>
    %141 = arith.addf %138, %140 : vector<16x128xf32>
    %142 = arith.addf %141, %116 : vector<16x128xf32>
    %cst_64 = arith.constant 5.000000e-01 : f32
    %143 = vector.broadcast %cst_64 : f32 to vector<16x128xf32>
    %144 = arith.mulf %143, %142 : vector<16x128xf32>
    %145 = arith.mulf %142, %142 : vector<16x128xf32>
    %146 = arith.mulf %145, %142 : vector<16x128xf32>
    %cst_65 = arith.constant 4.471500e-02 : f32
    %147 = vector.broadcast %cst_65 : f32 to vector<16x128xf32>
    %148 = arith.mulf %147, %146 : vector<16x128xf32>
    %149 = arith.addf %142, %148 : vector<16x128xf32>
    %cst_66 = arith.constant 0.797884583 : f32
    %150 = vector.broadcast %cst_66 : f32 to vector<16x128xf32>
    %151 = arith.mulf %150, %149 : vector<16x128xf32>
    %152 = math.tanh %151 : vector<16x128xf32>
    %cst_67 = arith.constant 1.000000e+00 : f32
    %153 = vector.broadcast %cst_67 : f32 to vector<16x128xf32>
    %154 = arith.addf %153, %152 : vector<16x128xf32>
    %155 = arith.mulf %144, %154 : vector<16x128xf32>
    %c0_68 = arith.constant 0 : index
    %c0_69 = arith.constant 0 : index
    %c0_70 = arith.constant 0 : index
    %156 = vector.load %arg13[%c0_68, %c0_69, %c0_70] : memref<1x16x128xf32, #tpu.memory_space<vmem>>, vector<1x16x128xf32>
    %157 = vector.shape_cast %156 : vector<1x16x128xf32> to vector<16x128xf32>
    %158 = vector.shape_cast %155 : vector<16x128xf32> to vector<1x16x128xf32>
    tpu.vector_store %arg13[%c0_68, %c0_69, %c0_70], %158 {strides = array<i32>} : memref<1x16x128xf32, #tpu.memory_space<vmem>>, vector<1x16x128xf32>,
    return
  }
  func.func @transform_0(%arg0: i32, %arg1: i32) -> (i32, i32, i32) {
    %c0_i32 = arith.constant 0 : i32
    %c0_i32_0 = arith.constant 0 : i32
    return %arg0, %arg1, %c0_i32 : i32, i32, i32
  }
  func.func @transform_1(%arg0: i32, %arg1: i32) -> (i32, i32, i32) {
    %c0_i32 = arith.constant 0 : i32
    %c0_i32_0 = arith.constant 0 : i32
    %c0_i32_1 = arith.constant 0 : i32
    return %arg0, %c0_i32, %c0_i32_0 : i32, i32, i32
  }
  func.func @transform_2(%arg0: i32, %arg1: i32) -> (i32, i32, i32) {
    %c0_i32 = arith.constant 0 : i32
    %c0_i32_0 = arith.constant 0 : i32
    return %arg0, %arg1, %c0_i32 : i32, i32, i32
  }
  func.func @transform_3(%arg0: i32, %arg1: i32) -> (i32, i32, i32) {
    %c0_i32 = arith.constant 0 : i32
    %c0_i32_0 = arith.constant 0 : i32
    %c0_i32_1 = arith.constant 0 : i32
    return %arg0, %c0_i32, %c0_i32_0 : i32, i32, i32
  }
  func.func @transform_4(%arg0: i32, %arg1: i32) -> (i32, i32) {
    %c0_i32 = arith.constant 0 : i32
    %c0_i32_0 = arith.constant 0 : i32
    %c0_i32_1 = arith.constant 0 : i32
    return %c0_i32, %c0_i32_0 : i32, i32
  }
  func.func @transform_5(%arg0: i32, %arg1: i32) -> (i32, i32) {
    %c0_i32 = arith.constant 0 : i32
    %c0_i32_0 = arith.constant 0 : i32
    %c0_i32_1 = arith.constant 0 : i32
    return %c0_i32, %c0_i32_0 : i32, i32
  }
  func.func @transform_6(%arg0: i32, %arg1: i32) -> (i32, i32) {
    %c0_i32 = arith.constant 0 : i32
    %c0_i32_0 = arith.constant 0 : i32
    %c0_i32_1 = arith.constant 0 : i32
    return %c0_i32, %c0_i32_0 : i32, i32
  }
  func.func @transform_7(%arg0: i32, %arg1: i32) -> (i32, i32) {
    %c0_i32 = arith.constant 0 : i32
    %c0_i32_0 = arith.constant 0 : i32
    %c0_i32_1 = arith.constant 0 : i32
    return %c0_i32, %c0_i32_0 : i32, i32
  }
  func.func @transform_8(%arg0: i32, %arg1: i32) -> (i32, i32) {
    %c0_i32 = arith.constant 0 : i32
    %c0_i32_0 = arith.constant 0 : i32
    %c0_i32_1 = arith.constant 0 : i32
    return %c0_i32, %c0_i32_0 : i32, i32
  }
  func.func @transform_9(%arg0: i32, %arg1: i32) -> (i32, i32) {
    %c0_i32 = arith.constant 0 : i32
    %c0_i32_0 = arith.constant 0 : i32
    %c0_i32_1 = arith.constant 0 : i32
    return %c0_i32, %c0_i32_0 : i32, i32
  }
  func.func @transform_10(%arg0: i32, %arg1: i32) -> (i32, i32) {
    %c0_i32 = arith.constant 0 : i32
    %c0_i32_0 = arith.constant 0 : i32
    %c0_i32_1 = arith.constant 0 : i32
    return %c0_i32, %c0_i32_0 : i32, i32
  }
  func.func @transform_11(%arg0: i32, %arg1: i32) -> (i32, i32, i32) {
    %c0_i32 = arith.constant 0 : i32
    %c0_i32_0 = arith.constant 0 : i32
    return %arg0, %arg1, %c0_i32 : i32, i32, i32
  }
}

</mosaic_0001>

<llo_original>
// kernel: tpu_custom_call.1
$region0: #{tpu_custom_call.1}
  #allocation0 [shape = 'u32[]', space=smem, size = 0x4, offset = 0x4, fixed_abs, tag = 'smem constant byte address 0x4 - core index']
  #allocation1 [shape = 'u32[144,128]{1,0:T(1,128)}', space=vmem, size = 0x12000, scoped, tag = 'internal scratch']
  %s0 = inlined_call_operand.vmem [shape: f32[2,16,3], index: 0, kind: input, shape index: {}]
  %s1 = inlined_call_operand.vmem [shape: f32[2,8,3], index: 1, kind: input, shape index: {}]
  %s2 = inlined_call_operand.vmem [shape: bf16[2,16,8], index: 2, kind: input, shape index: {}]
  %s3 = inlined_call_operand.vmem [shape: bf16[2,8,8], index: 3, kind: input, shape index: {}]
  %s4 = inlined_call_operand.vmem [shape: bf16[8,128], index: 4, kind: input, shape index: {}]
  %s5 = inlined_call_operand.vmem [shape: bf16[8,128], index: 5, kind: input, shape index: {}]
  %s6 = inlined_call_operand.vmem [shape: f32[1,128], index: 6, kind: input, shape index: {}]
  %s7 = inlined_call_operand.vmem [shape: bf16[128,128], index: 7, kind: input, shape index: {}]
  %s8 = inlined_call_operand.vmem [shape: f32[1,128], index: 8, kind: input, shape index: {}]
  %s9 = inlined_call_operand.hbm [shape: bf16[128,128], index: 9, kind: input, shape index: {}]
  %s10 = inlined_call_operand.vmem [shape: f32[1,128], index: 10, kind: input, shape index: {}]
  %s11 = inlined_call_operand.hbm [shape: f32[2,16,128], index: 11, kind: output, shape index: {}]
  %s12 = sld [smem:[#allocation0]]
  $region81: #{tpu_custom_call.1} parent=0
    _
  %s14 = ssub.s32 1, %s12
  %s15 = scalar_select 0, %s14, %s12
  $region1: #{tpu_custom_call.1} parent=0
    #allocation2 [shape = 'u8[32768]{0}', space=vmem, size = 0x8000, scoped, tag = 'input window, operand 9, single buffered']
    #allocation3 [shape = 's32[2]{0}', space=sflag, size = 0x8, scoped, tag = 'scoped memory for tpu_custom_call.1']
    #allocation4 [shape = 's32[2]{0}', space=sflag, size = 0x8, scoped, tag = 'scoped memory for tpu_custom_call.1']
    #allocation5 [shape = 'u8[16384]{0}', space=vmem, size = 0x4000, scoped, tag = 'output window, operand 0']
    %16 = vsyncpa [#allocation3], 0
    %17 = vsyncpa [#allocation4], 0
    %s18 = scalar_lea.sflag [#allocation4], 1
    %19 = vsyncpa %s18, 0
    loop: start=0, step=1, limit=4
    $region2: #{tpu_custom_call.1} parent=1 // loop_pre_header
      _
    $region3: #{tpu_custom_call.1} parent=1 // loop_header
      %s21 = sphi 0, %s25
      %p22 = scmp.ge.s32.totalorder %s21, 4
      %s28 = sphi 0, %s40
      %s29 = sphi 0, %s36
      %s30 = sphi 0, %s28
      %s31 = sphi 0, %s29
      %s32 = sphi 0, %s30
      %s33 = sphi 0, %s31
      %s45 = sphi 0, %s47
      %s48 = sphi 0, %s45
      %s49 = sphi 0, %s48
      %s65 = sphi 0, %s49
      %s71 = sphi 0, %s73
      %s74 = sphi 0, %s71
      %s75 = sphi 0, %s74
      %s91 = sphi 0, %s75
      %s99 = sphi 0, %s101
      %s102 = sphi 0, %s99
      %s103 = sphi 0, %s102
      %s119 = sphi 0, %s103
      %s125 = sphi 0, %s127
      %s128 = sphi 0, %s125
      %s129 = sphi 0, %s128
      %s145 = sphi 0, %s129
      %s149 = sphi 0, %s149
      %s151 = sphi 0, %s149
      %s152 = sphi 0, %s151
      %s166 = sphi 0, %s152
      %s170 = sphi 0, %s170
      %s172 = sphi 0, %s170
      %s173 = sphi 0, %s172
      %s187 = sphi 0, %s173
      %s191 = sphi 0, %s191
      %s193 = sphi 0, %s191
      %s194 = sphi 0, %s193
      %s208 = sphi 0, %s194
      %s212 = sphi 0, %s212
      %s214 = sphi 0, %s212
      %s215 = sphi 0, %s214
      %s229 = sphi 0, %s215
      %s233 = sphi 0, %s233
      %s235 = sphi 0, %s233
      %s236 = sphi 0, %s235
      %s250 = sphi 0, %s236
      %s254 = sphi 0, %s254
      %s256 = sphi 0, %s254
      %s257 = sphi 0, %s256
      %s271 = sphi 0, %s257
      %s275 = sphi 0, %s275
      %s277 = sphi 0, %s275
      %s278 = sphi 0, %s277
      %s292 = sphi 0, %s278
      %s300 = sphi 0, %s302
      %s303 = sphi 0, %s300
      %s304 = sphi 0, %s303
      %s320 = sphi 0, %s304
    $region4: #{tpu_custom_call.1} parent=1 // loop_header_branch
      %24 = sbr.rel (%p22) target = $region8
    $region5: #{tpu_custom_call.1} parent=1 // loop_body
      %s26 = ssub.s32 %s21, 1
      %s27 = ssub.s32 %s21, 2
      %s34 = sadd.s32 1, %s29
      %p35 = scmp.ge.s32.totalorder %s34, 1
      %s36 = scalar_select %p35, 0, %s34
      %s37 = sadd.s32 1, %s28
      %s38 = scalar_select %p35, %s37, %s28
      %p39 = scmp.ge.s32.totalorder %s38, 2
      %s40 = scalar_select %p39, 0, %s38
      %s41 = ssub.s32 %s28, %s40
      %s42 = ssub.s32 %s29, %s36
      %s43 = sor.u32 %s41, %s42
      %p44 = scmp.eq.s32.totalorder %s43, 0
      %s46 = sadd.s32 %s45, 1
      %s47 = scalar_select %p44, %s45, %s46
      %p50 = pneg %p44
      %p51 = scmp.eq.s32.totalorder %s21, 1
      %p52 = por %p50, %p51
      %p53 = scmp.ne.s32.totalorder %s45, %s48
      %p54 = scmp.eq.s32.totalorder %s21, 0
      %p55 = por %p53, %p54
      %p56 = scmp.ne.s32.totalorder %s45, %s48
      %p57 = scmp.eq.s32.totalorder %s26, 1
      %p58 = por %p56, %p57
      %p59 = scmp.ne.s32.totalorder %s48, %s49
      %p60 = scmp.eq.s32.totalorder %s26, 0
      %p61 = por %p59, %p60
      %p62 = scmp.ne.s32.totalorder %s48, %s49
      %p63 = scmp.eq.s32.totalorder %s27, 1
      %p64 = por %p62, %p63
      %p66 = scmp.ne.s32.totalorder %s49, %s65
      %p67 = scmp.eq.s32.totalorder %s27, 0
      %p68 = por %p66, %p67
      %s69 = ssub.s32 %s28, %s40
      %p70 = scmp.eq.s32.totalorder %s69, 0
      %s72 = sadd.s32 %s71, 1
      %s73 = scalar_select %p70, %s71, %s72
      %p76 = pneg %p70
      %p77 = scmp.eq.s32.totalorder %s21, 1
      %p78 = por %p76, %p77
      %p79 = scmp.ne.s32.totalorder %s71, %s74
      %p80 = scmp.eq.s32.totalorder %s21, 0
      %p81 = por %p79, %p80
      %p82 = scmp.ne.s32.totalorder %s71, %s74
      %p83 = scmp.eq.s32.totalorder %s26, 1
      %p84 = por %p82, %p83
      %p85 = scmp.ne.s32.totalorder %s74, %s75
      %p86 = scmp.eq.s32.totalorder %s26, 0
      %p87 = por %p85, %p86
      %p88 = scmp.ne.s32.totalorder %s74, %s75
      %p89 = scmp.eq.s32.totalorder %s27, 1
      %p90 = por %p88, %p89
      %p92 = scmp.ne.s32.totalorder %s75, %s91
      %p93 = scmp.eq.s32.totalorder %s27, 0
      %p94 = por %p92, %p93
      %s95 = ssub.s32 %s28, %s40
      %s96 = ssub.s32 %s29, %s36
      %s97 = sor.u32 %s95, %s96
      %p98 = scmp.eq.s32.totalorder %s97, 0
      %s100 = sadd.s32 %s99, 1
      %s101 = scalar_select %p98, %s99, %s100
      %p104 = pneg %p98
      %p105 = scmp.eq.s32.totalorder %s21, 1
      %p106 = por %p104, %p105
      %p107 = scmp.ne.s32.totalorder %s99, %s102
      %p108 = scmp.eq.s32.totalorder %s21, 0
      %p109 = por %p107, %p108
      %p110 = scmp.ne.s32.totalorder %s99, %s102
      %p111 = scmp.eq.s32.totalorder %s26, 1
      %p112 = por %p110, %p111
      %p113 = scmp.ne.s32.totalorder %s102, %s103
      %p114 = scmp.eq.s32.totalorder %s26, 0
      %p115 = por %p113, %p114
      %p116 = scmp.ne.s32.totalorder %s102, %s103
      %p117 = scmp.eq.s32.totalorder %s27, 1
      %p118 = por %p116, %p117
      %p120 = scmp.ne.s32.totalorder %s103, %s119
      %p121 = scmp.eq.s32.totalorder %s27, 0
      %p122 = por %p120, %p121
      %s123 = ssub.s32 %s28, %s40
      %p124 = scmp.eq.s32.totalorder %s123, 0
      %s126 = sadd.s32 %s125, 1
      %s127 = scalar_select %p124, %s125, %s126
      %p130 = pneg %p124
      %p131 = scmp.eq.s32.totalorder %s21, 1
      %p132 = por %p130, %p131
      %p133 = scmp.ne.s32.totalorder %s125, %s128
      %p134 = scmp.eq.s32.totalorder %s21, 0
      %p135 = por %p133, %p134
      %p136 = scmp.ne.s32.totalorder %s125, %s128
      %p137 = scmp.eq.s32.totalorder %s26, 1
      %p138 = por %p136, %p137
      %p139 = scmp.ne.s32.totalorder %s128, %s129
      %p140 = scmp.eq.s32.totalorder %s26, 0
      %p141 = por %p139, %p140
      %p142 = scmp.ne.s32.totalorder %s128, %s129
      %p143 = scmp.eq.s32.totalorder %s27, 1
      %p144 = por %p142, %p143
      %p146 = scmp.ne.s32.totalorder %s129, %s145
      %p147 = scmp.eq.s32.totalorder %s27, 0
      %p148 = por %p146, %p147
      %s150 = sadd.s32 %s149, 1
      %p153 = scmp.eq.s32.totalorder %s21, 1
      %p154 = scmp.ne.s32.totalorder %s149, %s151
      %p155 = scmp.eq.s32.totalorder %s21, 0
      %p156 = por %p154, %p155
      %p157 = scmp.ne.s32.totalorder %s149, %s151
      %p158 = scmp.eq.s32.totalorder %s26, 1
      %p159 = por %p157, %p158
      %p160 = scmp.ne.s32.totalorder %s151, %s152
      %p161 = scmp.eq.s32.totalorder %s26, 0
      %p162 = por %p160, %p161
      %p163 = scmp.ne.s32.totalorder %s151, %s152
      %p164 = scmp.eq.s32.totalorder %s27, 1
      %p165 = por %p163, %p164
      %p167 = scmp.ne.s32.totalorder %s152, %s166
      %p168 = scmp.eq.s32.totalorder %s27, 0
      %p169 = por %p167, %p168
      %s171 = sadd.s32 %s170, 1
      %p174 = scmp.eq.s32.totalorder %s21, 1
      %p175 = scmp.ne.s32.totalorder %s170, %s172
      %p176 = scmp.eq.s32.totalorder %s21, 0
      %p177 = por %p175, %p176
      %p178 = scmp.ne.s32.totalorder %s170, %s172
      %p179 = scmp.eq.s32.totalorder %s26, 1
      %p180 = por %p178, %p179
      %p181 = scmp.ne.s32.totalorder %s172, %s173
      %p182 = scmp.eq.s32.totalorder %s26, 0
      %p183 = por %p181, %p182
      %p184 = scmp.ne.s32.totalorder %s172, %s173
      %p185 = scmp.eq.s32.totalorder %s27, 1
      %p186 = por %p184, %p185
      %p188 = scmp.ne.s32.totalorder %s173, %s187
      %p189 = scmp.eq.s32.totalorder %s27, 0
      %p190 = por %p188, %p189
      %s192 = sadd.s32 %s191, 1
      %p195 = scmp.eq.s32.totalorder %s21, 1
      %p196 = scmp.ne.s32.totalorder %s191, %s193
      %p197 = scmp.eq.s32.totalorder %s21, 0
      %p198 = por %p196, %p197
      %p199 = scmp.ne.s32.totalorder %s191, %s193
      %p200 = scmp.eq.s32.totalorder %s26, 1
      %p201 = por %p199, %p200
      %p202 = scmp.ne.s32.totalorder %s193, %s194
      %p203 = scmp.eq.s32.totalorder %s26, 0
      %p204 = por %p202, %p203
      %p205 = scmp.ne.s32.totalorder %s193, %s194
      %p206 = scmp.eq.s32.totalorder %s27, 1
      %p207 = por %p205, %p206
      %p209 = scmp.ne.s32.totalorder %s194, %s208
      %p210 = scmp.eq.s32.totalorder %s27, 0
      %p211 = por %p209, %p210
      %s213 = sadd.s32 %s212, 1
      %p216 = scmp.eq.s32.totalorder %s21, 1
      %p217 = scmp.ne.s32.totalorder %s212, %s214
      %p218 = scmp.eq.s32.totalorder %s21, 0
      %p219 = por %p217, %p218
      %p220 = scmp.ne.s32.totalorder %s212, %s214
      %p221 = scmp.eq.s32.totalorder %s26, 1
      %p222 = por %p220, %p221
      %p223 = scmp.ne.s32.totalorder %s214, %s215
      %p224 = scmp.eq.s32.totalorder %s26, 0
      %p225 = por %p223, %p224
      %p226 = scmp.ne.s32.totalorder %s214, %s215
      %p227 = scmp.eq.s32.totalorder %s27, 1
      %p228 = por %p226, %p227
      %p230 = scmp.ne.s32.totalorder %s215, %s229
      %p231 = scmp.eq.s32.totalorder %s27, 0
      %p232 = por %p230, %p231
      %s234 = sadd.s32 %s233, 1
      %p237 = scmp.eq.s32.totalorder %s21, 1
      %p238 = scmp.ne.s32.totalorder %s233, %s235
      %p239 = scmp.eq.s32.totalorder %s21, 0
      %p240 = por %p238, %p239
      %p241 = scmp.ne.s32.totalorder %s233, %s235
      %p242 = scmp.eq.s32.totalorder %s26, 1
      %p243 = por %p241, %p242
      %p244 = scmp.ne.s32.totalorder %s235, %s236
      %p245 = scmp.eq.s32.totalorder %s26, 0
      %p246 = por %p244, %p245
      %p247 = scmp.ne.s32.totalorder %s235, %s236
      %p248 = scmp.eq.s32.totalorder %s27, 1
      %p249 = por %p247, %p248
      %p251 = scmp.ne.s32.totalorder %s236, %s250
      %p252 = scmp.eq.s32.totalorder %s27, 0
      %p253 = por %p251, %p252
      %s255 = sadd.s32 %s254, 1
      %p258 = scmp.eq.s32.totalorder %s21, 1
      %p259 = scmp.ne.s32.totalorder %s254, %s256
      %p260 = scmp.eq.s32.totalorder %s21, 0
      %p261 = por %p259, %p260
      %p262 = scmp.ne.s32.totalorder %s254, %s256
      %p263 = scmp.eq.s32.totalorder %s26, 1
      %p264 = por %p262, %p263
      %p265 = scmp.ne.s32.totalorder %s256, %s257
      %p266 = scmp.eq.s32.totalorder %s26, 0
      %p267 = por %p265, %p266
      %p268 = scmp.ne.s32.totalorder %s256, %s257
      %p269 = scmp.eq.s32.totalorder %s27, 1
      %p270 = por %p268, %p269
      %p272 = scmp.ne.s32.totalorder %s257, %s271
      %p273 = scmp.eq.s32.totalorder %s27, 0
      %p274 = por %p272, %p273
      %s276 = sadd.s32 %s275, 1
      %p279 = scmp.eq.s32.totalorder %s21, 1
      %p280 = scmp.ne.s32.totalorder %s275, %s277
      %p281 = scmp.eq.s32.totalorder %s21, 0
      %p282 = por %p280, %p281
      %p283 = scmp.ne.s32.totalorder %s275, %s277
      %p284 = scmp.eq.s32.totalorder %s26, 1
      %p285 = por %p283, %p284
      %p286 = scmp.ne.s32.totalorder %s277, %s278
      %p287 = scmp.eq.s32.totalorder %s26, 0
      %p288 = por %p286, %p287
      %p289 = scmp.ne.s32.totalorder %s277, %s278
      %p290 = scmp.eq.s32.totalorder %s27, 1
      %p291 = por %p289, %p290
      %p293 = scmp.ne.s32.totalorder %s278, %s292
      %p294 = scmp.eq.s32.totalorder %s27, 0
      %p295 = por %p293, %p294
      %s296 = ssub.s32 %s28, %s40
      %s297 = ssub.s32 %s29, %s36
      %s298 = sor.u32 %s296, %s297
      %p299 = scmp.eq.s32.totalorder %s298, 0
      %s301 = sadd.s32 %s300, 1
      %s302 = scalar_select %p299, %s300, %s301
      %p305 = pneg %p299
      %p306 = scmp.eq.s32.totalorder %s21, 1
      %p307 = por %p305, %p306
      %p308 = scmp.ne.s32.totalorder %s300, %s303
      %p309 = scmp.eq.s32.totalorder %s21, 0
      %p310 = por %p308, %p309
      %p311 = scmp.ne.s32.totalorder %s300, %s303
      %p312 = scmp.eq.s32.totalorder %s26, 1
      %p313 = por %p311, %p312
      %p314 = scmp.ne.s32.totalorder %s303, %s304
      %p315 = scmp.eq.s32.totalorder %s26, 0
      %p316 = por %p314, %p315
      %p317 = scmp.ne.s32.totalorder %s303, %s304
      %p318 = scmp.eq.s32.totalorder %s27, 1
      %p319 = por %p317, %p318
      %p321 = scmp.ne.s32.totalorder %s304, %s320
      %p322 = scmp.eq.s32.totalorder %s27, 0
      %p323 = por %p321, %p322
      %p324 = scmp.le.s32.totalorder 1, %s21
      %p325 = scmp.lt.s32.totalorder %s21, 3
      %p326 = pnand %p324, %p325
      %p327 = pneg %p326
      // Predicated region
      $region9: #{tpu_custom_call.1} parent=5 // pred_check
        _
      $region10: #{tpu_custom_call.1} parent=5 // pred_check_branch
        %329 = sbr.rel (%p326) target = $region12
      $region11: #{tpu_custom_call.1} parent=5 // pred_region
        %s330 = ssub.s32 %s21, 1
        // Predicated region
        $region13: #{tpu_custom_call.1} parent=11 // pred_check
          %p331 = pneg %p162
        $region14: #{tpu_custom_call.1} parent=11 // pred_check_branch
          %333 = sbr.rel (%p331) target = $region16
        $region15: #{tpu_custom_call.1} parent=11 // pred_region
          _
        $region16: #{tpu_custom_call.1} parent=11 // pred_fallthru
          _
        // Predicated region
        $region17: #{tpu_custom_call.1} parent=11 // pred_check
          %p334 = pneg %p183
        $region18: #{tpu_custom_call.1} parent=11 // pred_check_branch
          %336 = sbr.rel (%p334) target = $region20
        $region19: #{tpu_custom_call.1} parent=11 // pred_region
          _
        $region20: #{tpu_custom_call.1} parent=11 // pred_fallthru
          _
        // Predicated region
        $region21: #{tpu_custom_call.1} parent=11 // pred_check
          %p337 = pneg %p204
        $region22: #{tpu_custom_call.1} parent=11 // pred_check_branch
          %339 = sbr.rel (%p337) target = $region24
        $region23: #{tpu_custom_call.1} parent=11 // pred_region
          _
        $region24: #{tpu_custom_call.1} parent=11 // pred_fallthru
          _
        // Predicated region
        $region25: #{tpu_custom_call.1} parent=11 // pred_check
          %p340 = pneg %p225
        $region26: #{tpu_custom_call.1} parent=11 // pred_check_branch
          %342 = sbr.rel (%p340) target = $region28
        $region27: #{tpu_custom_call.1} parent=11 // pred_region
          _
        $region28: #{tpu_custom_call.1} parent=11 // pred_fallthru
          _
        // Predicated region
        $region29: #{tpu_custom_call.1} parent=11 // pred_check
          %p343 = pneg %p246
        $region30: #{tpu_custom_call.1} parent=11 // pred_check_branch
          %345 = sbr.rel (%p343) target = $region32
        $region31: #{tpu_custom_call.1} parent=11 // pred_region
          _
        $region32: #{tpu_custom_call.1} parent=11 // pred_fallthru
          _
        // Predicated region
        $region33: #{tpu_custom_call.1} parent=11 // pred_check
          %p346 = pneg %p267
        $region34: #{tpu_custom_call.1} parent=11 // pred_check_branch
          %348 = sbr.rel (%p346) target = $region36
        $region35: #{tpu_custom_call.1} parent=11 // pred_region
          %s350 = ssub.s32 1024, 1024
          %351 = vsyncadd [#allocation3], %s350
          %s352 = sshll.u32 [#allocation2], 4
          %s353 = int_to_ptr.vmem [resolvable:$true] %s352
          %358 = dma.hbm_to_vmem [thread:$0]  %s9, 1024, %s353, [#allocation3], 64, 64, 4
        $region36: #{tpu_custom_call.1} parent=11 // pred_fallthru
          _
        // Predicated region
        $region37: #{tpu_custom_call.1} parent=11 // pred_check
          %p359 = pneg %p288
        $region38: #{tpu_custom_call.1} parent=11 // pred_check_branch
          %361 = sbr.rel (%p359) target = $region40
        $region39: #{tpu_custom_call.1} parent=11 // pred_region
          _
        $region40: #{tpu_custom_call.1} parent=11 // pred_fallthru
          _
      $region12: #{tpu_custom_call.1} parent=5 // pred_fallthru
        _
      %p362 = scmp.lt.s32.totalorder %s21, 2
      // Predicated region
      $region41: #{tpu_custom_call.1} parent=5 // pred_check
        %p363 = pneg %p362
      $region42: #{tpu_custom_call.1} parent=5 // pred_check_branch
        %365 = sbr.rel (%p363) target = $region44
      $region43: #{tpu_custom_call.1} parent=5 // pred_region
        // Predicated region
        $region45: #{tpu_custom_call.1} parent=43 // pred_check
          %p366 = pneg %p55
        $region46: #{tpu_custom_call.1} parent=43 // pred_check_branch
          %368 = sbr.rel (%p366) target = $region48
        $region47: #{tpu_custom_call.1} parent=43 // pred_region
          %s369 = smul.u32 2, %s29
          %p370 = scmp.lt.s32.totalorder %s28, 1
          %s371 = scalar_select %p370, %s28, 1
          %p372 = scmp.lt.s32.totalorder %s369, 1
          %s373 = scalar_select %p372, %s369, 1
          %s374 = smul.addr %s371, 2
          %s375 = sadd.s32 %s373, %s374
          %s376 = smul.addr %s375, 8
          %s377 = scalar_lea.vmem %s0, %s376
          %s378 = smul.u32 2, %s29
        $region48: #{tpu_custom_call.1} parent=43 // pred_fallthru
          _
        // Predicated region
        $region49: #{tpu_custom_call.1} parent=43 // pred_check
          %p379 = pneg %p81
        $region50: #{tpu_custom_call.1} parent=43 // pred_check_branch
          %381 = sbr.rel (%p379) target = $region52
        $region51: #{tpu_custom_call.1} parent=43 // pred_region
          %p382 = scmp.lt.s32.totalorder %s28, 1
          %s383 = scalar_select %p382, %s28, 1
          %s384 = smul.addr %s383, 8
          %s385 = scalar_lea.vmem %s1, %s384
        $region52: #{tpu_custom_call.1} parent=43 // pred_fallthru
          _
        // Predicated region
        $region53: #{tpu_custom_call.1} parent=43 // pred_check
          %p386 = pneg %p109
        $region54: #{tpu_custom_call.1} parent=43 // pred_check_branch
          %388 = sbr.rel (%p386) target = $region56
        $region55: #{tpu_custom_call.1} parent=43 // pred_region
          %s389 = smul.u32 2, %s29
          %p390 = scmp.lt.s32.totalorder %s28, 1
          %s391 = scalar_select %p390, %s28, 1
          %p392 = scmp.lt.s32.totalorder %s389, 1
          %s393 = scalar_select %p392, %s389, 1
          %s394 = smul.addr %s391, 2
          %s395 = sadd.s32 %s393, %s394
          %s396 = smul.addr %s395, 4
          %s397 = scalar_lea.vmem %s2, %s396
          %s398 = smul.u32 2, %s29
        $region56: #{tpu_custom_call.1} parent=43 // pred_fallthru
          _
        // Predicated region
        $region57: #{tpu_custom_call.1} parent=43 // pred_check
          %p399 = pneg %p135
        $region58: #{tpu_custom_call.1} parent=43 // pred_check_branch
          %401 = sbr.rel (%p399) target = $region60
        $region59: #{tpu_custom_call.1} parent=43 // pred_region
          %p402 = scmp.lt.s32.totalorder %s28, 1
          %s403 = scalar_select %p402, %s28, 1
          %s404 = smul.addr %s403, 4
          %s405 = scalar_lea.vmem %s3, %s404
        $region60: #{tpu_custom_call.1} parent=43 // pred_fallthru
          _
      $region44: #{tpu_custom_call.1} parent=5 // pred_fallthru
        _
      %p406 = scmp.le.s32.totalorder 1, %s21
      %p407 = scmp.lt.s32.totalorder %s21, 3
      %p408 = pnand %p406, %p407
      %p409 = pneg %p408
      // Predicated region
      $region61: #{tpu_custom_call.1} parent=5 // pred_check
        _
      $region62: #{tpu_custom_call.1} parent=5 // pred_check_branch
        %411 = sbr.rel (%p408) target = $region64
      $region63: #{tpu_custom_call.1} parent=5 // pred_region
        %s412 = ssub.s32 %s21, 1
        // Predicated region
        $region65: #{tpu_custom_call.1} parent=63 // pred_check
          %p413 = pneg %p267
        $region66: #{tpu_custom_call.1} parent=63 // pred_check_branch
          %415 = sbr.rel (%p413) target = $region68
        $region67: #{tpu_custom_call.1} parent=63 // pred_region
          %416 = dma.done [#allocation3], 1024
        $region68: #{tpu_custom_call.1} parent=63 // pred_fallthru
          _
        %s417 = smul.u32 2, %s31
        %p418 = scmp.lt.s32.totalorder %s30, 1
        %s419 = scalar_select %p418, %s30, 1
        %p420 = scmp.lt.s32.totalorder %s417, 1
        %s421 = scalar_select %p420, %s417, 1
        %s422 = smul.addr %s419, 2
        %s423 = sadd.s32 %s421, %s422
        %s424 = smul.addr %s423, 8
        %s425 = scalar_lea.vmem %s0, %s424
        %p426 = pneg %p61
        %p427 = pneg %p58
        %p428 = scmp.lt.s32.totalorder %s30, 1
        %s429 = scalar_select %p428, %s30, 1
        %s430 = smul.addr %s429, 8
        %s431 = scalar_lea.vmem %s1, %s430
        %p432 = pneg %p87
        %p433 = pneg %p84
        %s434 = smul.u32 2, %s31
        %p435 = scmp.lt.s32.totalorder %s30, 1
        %s436 = scalar_select %p435, %s30, 1
        %p437 = scmp.lt.s32.totalorder %s434, 1
        %s438 = scalar_select %p437, %s434, 1
        %s439 = smul.addr %s436, 2
        %s440 = sadd.s32 %s438, %s439
        %s441 = smul.addr %s440, 4
        %s442 = scalar_lea.vmem %s2, %s441
        %p443 = pneg %p115
        %p444 = pneg %p112
        %p445 = scmp.lt.s32.totalorder %s30, 1
        %s446 = scalar_select %p445, %s30, 1
        %s447 = smul.addr %s446, 4
        %s448 = scalar_lea.vmem %s3, %s447
        %p449 = pneg %p141
        %p450 = pneg %p138
        %p451 = pneg %p162
        %p452 = pneg %p159
        %p453 = pneg %p183
        %p454 = pneg %p180
        %p455 = pneg %p204
        %p456 = pneg %p201
        %p457 = pneg %p225
        %p458 = pneg %p222
        %p459 = pneg %p246
        %p460 = pneg %p243
        %p461 = pneg %p267
        %p462 = pneg %p264
        %p463 = pneg %p288
        %p464 = pneg %p285
        %p465 = pneg %p316
        %p466 = pneg %p313
        %s467 = sand.u32 %s303, 1
        %s468 = scalar_lea.sflag [#allocation4], %s467
        %s469 = sand.u32 %s303, 1
        %s470 = smul.addr %s469, 16
        %s471 = scalar_lea.vmem [#allocation5], %s470
        %s472 = smul.u32 2, %s31
        %p473 = scmp.lt.s32.totalorder %s30, 1
        %s474 = scalar_select %p473, %s30, 1
        %p475 = scmp.lt.s32.totalorder %s472, 1
        %s476 = scalar_select %p475, %s472, 1
        %s477 = smul.addr %s474, 2
        %s478 = sadd.s32 %s476, %s477
        %s479 = smul.addr %s478, 8
        %s480 = scalar_lea.vmem %s0, %s479
        %s481 = smul.u32 2, %s31
        %p482 = scmp.lt.s32.totalorder %s30, 1
        %s483 = scalar_select %p482, %s30, 1
        %s484 = smul.addr %s483, 8
        %s485 = scalar_lea.vmem %s1, %s484
        %s486 = smul.u32 2, %s31
        %p487 = scmp.lt.s32.totalorder %s30, 1
        %s488 = scalar_select %p487, %s30, 1
        %p489 = scmp.lt.s32.totalorder %s486, 1
        %s490 = scalar_select %p489, %s486, 1
        %s491 = smul.addr %s488, 2
        %s492 = sadd.s32 %s490, %s491
        %s493 = smul.addr %s492, 4
        %s494 = scalar_lea.vmem %s2, %s493
        %s495 = smul.u32 2, %s31
        %p496 = scmp.lt.s32.totalorder %s30, 1
        %s497 = scalar_select %p496, %s30, 1
        %s498 = smul.addr %s497, 4
        %s499 = scalar_lea.vmem %s3, %s498
        %s500 = smul.u32 2, %s31
        %v502 = vld [vmem:[%s480] sm:$0xff]
        %v503 = vld [vmem:[%s480 + $0x8] sm:$0xff]
        %v504 = vld [vmem:[%s485] sm:$0xff]
        %v505 = vld [vmem:[%s494] sm:$0xf]
        %v506 = vld [vmem:[%s494 + $0x4] sm:$0xf]
        %v507 = vld [vmem:[%s499] sm:$0xf]
        %v508 = vmul.f32 %v502, -2.0
        %v509 = vmul.f32 %v503, -2.0
        %v510 = vmul.f32 %v504, %v504
        %vm511 = vcmask 23552
        %v513 = vsel %vm511, 1.0, 0
        %v516 = vsel %vm511, %v510, 0
        %518 = vmatprep.subr.mxu0 0.0
        %519 = vmatpush1.xpose.msra.mxu0 %v516
        %520 = vmatprep.subr.mxu0 0.0
        %521 = vmatpush1.xpose.msra.mxu0 0.0
        %522 = vmatprep.subr.mxu0 0.0
        %523 = vmatpush1.xpose.msra.mxu0 0.0
        %524 = vmatprep.subr.mxu0 0.0
        %525 = vmatpush1.xpose.msra.mxu0 0.0
        %526 = vmatprep.subr.mxu0 0.0
        %527 = vmatpush1.xpose.msra.mxu0 0.0
        %528 = vmatprep.subr.mxu0 0.0
        %529 = vmatpush1.xpose.msra.mxu0 0.0
        %530 = vmatprep.subr.mxu0 0.0
        %531 = vmatpush1.xpose.msra.mxu0 0.0
        %532 = vmatprep.subr.mxu0 0.0
        %533 = vmatpush1.xpose.msra.mxu0 0.0
        %534 = vmatprep.subr.mxu0 0.0
        %535 = vmatpush1.xpose.msra.mxu0 0.0
        %536 = vmatprep.subr.mxu0 0.0
        %537 = vmatpush1.xpose.msra.mxu0 0.0
        %538 = vmatprep.subr.mxu0 0.0
        %539 = vmatpush1.xpose.msra.mxu0 0.0
        %540 = vmatprep.subr.mxu0 0.0
        %541 = vmatpush1.xpose.msra.mxu0 0.0
        %542 = vmatprep.subr.mxu0 0.0
        %543 = vmatpush1.xpose.msra.mxu0 0.0
        %544 = vmatprep.subr.mxu0 0.0
        %545 = vmatpush1.xpose.msra.mxu0 0.0
        %546 = vmatprep.subr.mxu0 0.0
        %547 = vmatpush1.xpose.msra.mxu0 0.0
        %548 = vmatprep.subr.mxu0 0.0
        %549 = vmatpush1.xpose.msra.mxu0 0.0
        %550 = vmatprep.subr.mxu0 0.0
        %551 = vmatpush1.xpose.msra.mxu0 0.0
        %552 = vmatprep.subr.mxu0 0.0
        %553 = vmatpush1.xpose.msra.mxu0 0.0
        %554 = vmatprep.subr.mxu0 0.0
        %555 = vmatpush1.xpose.msra.mxu0 0.0
        %556 = vmatprep.subr.mxu0 0.0
        %557 = vmatpush1.xpose.msra.mxu0 0.0
        %558 = vmatprep.subr.mxu0 0.0
        %559 = vmatpush1.xpose.msra.mxu0 0.0
        %560 = vmatprep.subr.mxu0 0.0
        %561 = vmatpush1.xpose.msra.mxu0 0.0
        %562 = vmatprep.subr.mxu0 0.0
        %563 = vmatpush1.xpose.msra.mxu0 0.0
        %564 = vmatprep.subr.mxu0 0.0
        %565 = vmatpush1.xpose.msra.mxu0 0.0
        %566 = vmatprep.subr.mxu0 0.0
        %567 = vmatpush1.xpose.msra.mxu0 0.0
        %568 = vmatprep.subr.mxu0 0.0
        %569 = vmatpush1.xpose.msra.mxu0 0.0
        %570 = vmatprep.subr.mxu0 0.0
        %571 = vmatpush1.xpose.msra.mxu0 0.0
        %572 = vmatprep.subr.mxu0 0.0
        %573 = vmatpush1.xpose.msra.mxu0 0.0
        %574 = vmatprep.subr.mxu0 0.0
        %575 = vmatpush1.xpose.msra.mxu0 0.0
        %576 = vmatprep.subr.mxu0 0.0
        %577 = vmatpush1.xpose.msra.mxu0 0.0
        %578 = vmatprep.subr.mxu0 0.0
        %579 = vmatpush1.xpose.msra.mxu0 0.0
        %580 = vmatprep.subr.mxu0 0.0
        %581 = vmatpush1.xpose.msra.mxu0 0.0
        %582 = vmatprep.mubr.f32.mxu0 0.0
        %583 = vmatmul.mubr.f32.gmra.mrb[0].mxu0 %v513
        %v584 = vpop.f32.mrb[0].mxu0
        %v585 = vadd.f32 0.0, %v584
        %v586 = vpop.f32.mrb[0].mxu0
        %587 = vdwg.mxu0
        %v588 = vmul.f32 %v502, %v502
        %v589 = vmul.f32 %v503, %v503
        %v590 = vsel %vm511, %v588, 0.0
        %591 = vadd.xlane.f32.xlu0 %v590
        %v592 = vpop.xlane.xlu0 %591
        %v593 = vsel %vm511, %v589, 0.0
        %594 = vadd.xlane.f32.xlu0 %v593
        %v595 = vpop.xlane.xlu0 %594
        %v597 = vsel %vm511, %v508, 0
        %v600 = vsel %vm511, %v509, 0
        %v603 = vsel %vm511, %v504, 0
        %605 = vmatprep.subr.mxu0 0.0
        %606 = vmatpush1.xpose.msra.mxu0 %v603
        %607 = vmatprep.subr.mxu0 0.0
        %608 = vmatpush1.xpose.msra.mxu0 0.0
        %609 = vmatprep.subr.mxu0 0.0
        %610 = vmatpush1.xpose.msra.mxu0 0.0
        %611 = vmatprep.subr.mxu0 0.0
        %612 = vmatpush1.xpose.msra.mxu0 0.0
        %613 = vmatprep.subr.mxu0 0.0
        %614 = vmatpush1.xpose.msra.mxu0 0.0
        %615 = vmatprep.subr.mxu0 0.0
        %616 = vmatpush1.xpose.msra.mxu0 0.0
        %617 = vmatprep.subr.mxu0 0.0
        %618 = vmatpush1.xpose.msra.mxu0 0.0
        %619 = vmatprep.subr.mxu0 0.0
        %620 = vmatpush1.xpose.msra.mxu0 0.0
        %621 = vmatprep.subr.mxu0 0.0
        %622 = vmatpush1.xpose.msra.mxu0 0.0
        %623 = vmatprep.subr.mxu0 0.0
        %624 = vmatpush1.xpose.msra.mxu0 0.0
        %625 = vmatprep.subr.mxu0 0.0
        %626 = vmatpush1.xpose.msra.mxu0 0.0
        %627 = vmatprep.subr.mxu0 0.0
        %628 = vmatpush1.xpose.msra.mxu0 0.0
        %629 = vmatprep.subr.mxu0 0.0
        %630 = vmatpush1.xpose.msra.mxu0 0.0
        %631 = vmatprep.subr.mxu0 0.0
        %632 = vmatpush1.xpose.msra.mxu0 0.0
        %633 = vmatprep.subr.mxu0 0.0
        %634 = vmatpush1.xpose.msra.mxu0 0.0
        %635 = vmatprep.subr.mxu0 0.0
        %636 = vmatpush1.xpose.msra.mxu0 0.0
        %637 = vmatprep.subr.mxu0 0.0
        %638 = vmatpush1.xpose.msra.mxu0 0.0
        %639 = vmatprep.subr.mxu0 0.0
        %640 = vmatpush1.xpose.msra.mxu0 0.0
        %641 = vmatprep.subr.mxu0 0.0
        %642 = vmatpush1.xpose.msra.mxu0 0.0
        %643 = vmatprep.subr.mxu0 0.0
        %644 = vmatpush1.xpose.msra.mxu0 0.0
        %645 = vmatprep.subr.mxu0 0.0
        %646 = vmatpush1.xpose.msra.mxu0 0.0
        %647 = vmatprep.subr.mxu0 0.0
        %648 = vmatpush1.xpose.msra.mxu0 0.0
        %649 = vmatprep.subr.mxu0 0.0
        %650 = vmatpush1.xpose.msra.mxu0 0.0
        %651 = vmatprep.subr.mxu0 0.0
        %652 = vmatpush1.xpose.msra.mxu0 0.0
        %653 = vmatprep.subr.mxu0 0.0
        %654 = vmatpush1.xpose.msra.mxu0 0.0
        %655 = vmatprep.subr.mxu0 0.0
        %656 = vmatpush1.xpose.msra.mxu0 0.0
        %657 = vmatprep.subr.mxu0 0.0
        %658 = vmatpush1.xpose.msra.mxu0 0.0
        %659 = vmatprep.subr.mxu0 0.0
        %660 = vmatpush1.xpose.msra.mxu0 0.0
        %661 = vmatprep.subr.mxu0 0.0
        %662 = vmatpush1.xpose.msra.mxu0 0.0
        %663 = vmatprep.subr.mxu0 0.0
        %664 = vmatpush1.xpose.msra.mxu0 0.0
        %665 = vmatprep.subr.mxu0 0.0
        %666 = vmatpush1.xpose.msra.mxu0 0.0
        %667 = vmatprep.subr.mxu0 0.0
        %668 = vmatpush1.xpose.msra.mxu0 0.0
        %669 = vmatprep.mubr.f32.mxu0 0.0
        %670 = vmatmul.mubr.f32.gmra.mrb[0].mxu0 %v597
        %v671 = vpop.f32.mrb[0].mxu0
        %v672 = vadd.f32 %v592, %v671
        %v673 = vpop.f32.mrb[0].mxu0
        %674 = vmatprep.mubr.f32.mxu0 0.0
        %675 = vmatmul.mubr.f32.gmra.mrb[0].mxu0 %v600
        %v676 = vpop.f32.mrb[0].mxu0
        %v677 = vadd.f32 %v595, %v676
        %v678 = vpop.f32.mrb[0].mxu0
        %679 = vdwg.mxu0
        %v680 = vlaneseq
        %v681 = vshrl.u32 %v680, 7
        %v682 = vsub.s32 0, %v681
        %v683 = vrot.slane %v585, %v682
        %v684 = vadd.f32 %v672, %v683
        %v685 = vadd.f32 %v677, %v683
        %v686 = vmax.f32 %v684, 0.0
        %v687 = vmax.f32 %v685, 0.0
        %v688 = vlaneseq
        %v689 = vand.u32 %v688, 127
        %vm690 = vcmask 64512
        %v691 = vsel %vm690, %v686, inf
        %692 = vmin.xlane.f32.xlu0 %v691
        %v693 = vpop.xlane.xlu0 %692
        %v694 = vsel %vm690, %v687, inf
        %695 = vmin.xlane.f32.xlu0 %v694
        %v696 = vpop.xlane.xlu0 %695
        %vm697 = vcmp.eq.f32.partialorder %v686, %v693
        %vm698 = vcmp.eq.f32.partialorder %v687, %v696
        %v699 = vsel %vm697, %v689, 8
        %v700 = vsel %vm698, %v689, 8
        %v701 = vsel %vm690, %v699, 2147483647
        %v702 = vand.u32 %v701, 65535
        %v703 = vshra.s32 %v701, 16
        %v704 = vcvt.s32.f32 %v702
        %v705 = vcvt.s32.f32 %v703
        %706 = vmin.xlane.f32.xlu0 %v705
        %v707 = vpop.xlane.xlu0 %706
        %vm708 = vcmp.eq.f32.partialorder %v705, %v707
        %v709 = vsel %vm708, %v704, inf
        %710 = vmin.xlane.f32.xlu0 %v709
        %v711 = vpop.xlane.xlu0 %710
        %v712 = vcvt.f32.s32 %v711
        %v713 = vcvt.f32.s32 %v707
        %v714 = vshll.u32 %v713, 16
        %v715 = vadd.s32 %v714, %v712
        %v716 = vsel %vm690, %v700, 2147483647
        %v717 = vand.u32 %v716, 65535
        %v718 = vshra.s32 %v716, 16
        %v719 = vcvt.s32.f32 %v717
        %v720 = vcvt.s32.f32 %v718
        %721 = vmin.xlane.f32.xlu0 %v720
        %v722 = vpop.xlane.xlu0 %721
        %vm723 = vcmp.eq.f32.partialorder %v720, %v722
        %v724 = vsel %vm723, %v719, inf
        %725 = vmin.xlane.f32.xlu0 %v724
        %v726 = vpop.xlane.xlu0 %725
        %v727 = vcvt.f32.s32 %v726
        %v728 = vcvt.f32.s32 %v722
        %v729 = vshll.u32 %v728, 16
        %v730 = vadd.s32 %v729, %v727
        %vm731 = vcmp.eq.s32.totalorder %v689, %v715
        %vm732 = vcmp.eq.s32.totalorder %v689, %v730
        %v733 = vadd.f32 %v693, 1e-08
        %v734 = vadd.f32 %v696, 1e-08
        %v735 = vrcp.pop %v733
        %v736 = vmul.f32 1.0, %v735
        %v737 = vrcp.pop %v734
        %v738 = vmul.f32 1.0, %v737
        %v739 = vsel %vm731, %v736, 0.0
        %v740 = vsel %vm732, %v738, 0.0
        %v741 = vadd.f32 %v739, 0.0
        %v742 = vadd.f32 %v740, 0.0
        %v743 = vadd.f32 %v736, 0.0
        %v744 = vadd.f32 %v738, 0.0
        %v745 = vsel %vm731, inf, %v686
        %v746 = vsel %vm732, inf, %v687
        %v747 = vsel %vm690, %v745, inf
        %748 = vmin.xlane.f32.xlu0 %v747
        %v749 = vpop.xlane.xlu0 %748
        %v750 = vsel %vm690, %v746, inf
        %751 = vmin.xlane.f32.xlu0 %v750
        %v752 = vpop.xlane.xlu0 %751
        %vm753 = vcmp.eq.f32.partialorder %v745, %v749
        %vm754 = vcmp.eq.f32.partialorder %v746, %v752
        %v755 = vsel %vm753, %v689, 8
        %v756 = vsel %vm754, %v689, 8
        %v757 = vsel %vm690, %v755, 2147483647
        %v758 = vand.u32 %v757, 65535
        %v759 = vshra.s32 %v757, 16
        %v760 = vcvt.s32.f32 %v758
        %v761 = vcvt.s32.f32 %v759
        %762 = vmin.xlane.f32.xlu0 %v761
        %v763 = vpop.xlane.xlu0 %762
        %vm764 = vcmp.eq.f32.partialorder %v761, %v763
        %v765 = vsel %vm764, %v760, inf
        %766 = vmin.xlane.f32.xlu0 %v765
        %v767 = vpop.xlane.xlu0 %766
        %v768 = vcvt.f32.s32 %v767
        %v769 = vcvt.f32.s32 %v763
        %v770 = vshll.u32 %v769, 16
        %v771 = vadd.s32 %v770, %v768
        %v772 = vsel %vm690, %v756, 2147483647
        %v773 = vand.u32 %v772, 65535
        %v774 = vshra.s32 %v772, 16
        %v775 = vcvt.s32.f32 %v773
        %v776 = vcvt.s32.f32 %v774
        %777 = vmin.xlane.f32.xlu0 %v776
        %v778 = vpop.xlane.xlu0 %777
        %vm779 = vcmp.eq.f32.partialorder %v776, %v778
        %v780 = vsel %vm779, %v775, inf
        %781 = vmin.xlane.f32.xlu0 %v780
        %v782 = vpop.xlane.xlu0 %781
        %v783 = vcvt.f32.s32 %v782
        %v784 = vcvt.f32.s32 %v778
        %v785 = vshll.u32 %v784, 16
        %v786 = vadd.s32 %v785, %v783
        %vm787 = vcmp.eq.s32.totalorder %v689, %v771
        %vm788 = vcmp.eq.s32.totalorder %v689, %v786
        %v789 = vadd.f32 %v749, 1e-08
        %v790 = vadd.f32 %v752, 1e-08
        %v791 = vrcp.pop %v789
        %v792 = vmul.f32 1.0, %v791
        %v793 = vrcp.pop %v790
        %v794 = vmul.f32 1.0, %v793
        %v795 = vsel %vm787, %v792, 0.0
        %v796 = vsel %vm788, %v794, 0.0
        %v797 = vadd.f32 %v741, %v795
        %v798 = vadd.f32 %v742, %v796
        %v799 = vadd.f32 %v743, %v792
        %v800 = vadd.f32 %v744, %v794
        %v801 = vsel %vm787, inf, %v745
        %v802 = vsel %vm788, inf, %v746
        %v803 = vsel %vm690, %v801, inf
        %804 = vmin.xlane.f32.xlu0 %v803
        %v805 = vpop.xlane.xlu0 %804
        %v806 = vsel %vm690, %v802, inf
        %807 = vmin.xlane.f32.xlu0 %v806
        %v808 = vpop.xlane.xlu0 %807
        %vm809 = vcmp.eq.f32.partialorder %v801, %v805
        %vm810 = vcmp.eq.f32.partialorder %v802, %v808
        %v811 = vsel %vm809, %v689, 8
        %v812 = vsel %vm810, %v689, 8
        %v813 = vsel %vm690, %v811, 2147483647
        %v814 = vand.u32 %v813, 65535
        %v815 = vshra.s32 %v813, 16
        %v816 = vcvt.s32.f32 %v814
        %v817 = vcvt.s32.f32 %v815
        %818 = vmin.xlane.f32.xlu0 %v817
        %v819 = vpop.xlane.xlu0 %818
        %vm820 = vcmp.eq.f32.partialorder %v817, %v819
        %v821 = vsel %vm820, %v816, inf
        %822 = vmin.xlane.f32.xlu0 %v821
        %v823 = vpop.xlane.xlu0 %822
        %v824 = vcvt.f32.s32 %v823
        %v825 = vcvt.f32.s32 %v819
        %v826 = vshll.u32 %v825, 16
        %v827 = vadd.s32 %v826, %v824
        %v828 = vsel %vm690, %v812, 2147483647
        %v829 = vand.u32 %v828, 65535
        %v830 = vshra.s32 %v828, 16
        %v831 = vcvt.s32.f32 %v829
        %v832 = vcvt.s32.f32 %v830
        %833 = vmin.xlane.f32.xlu0 %v832
        %v834 = vpop.xlane.xlu0 %833
        %vm835 = vcmp.eq.f32.partialorder %v832, %v834
        %v836 = vsel %vm835, %v831, inf
        %837 = vmin.xlane.f32.xlu0 %v836
        %v838 = vpop.xlane.xlu0 %837
        %v839 = vcvt.f32.s32 %v838
        %v840 = vcvt.f32.s32 %v834
        %v841 = vshll.u32 %v840, 16
        %v842 = vadd.s32 %v841, %v839
        %vm843 = vcmp.eq.s32.totalorder %v689, %v827
        %vm844 = vcmp.eq.s32.totalorder %v689, %v842
        %v845 = vadd.f32 %v805, 1e-08
        %v846 = vadd.f32 %v808, 1e-08
        %v847 = vrcp.pop %v845
        %v848 = vmul.f32 1.0, %v847
        %v849 = vrcp.pop %v846
        %v850 = vmul.f32 1.0, %v849
        %v851 = vsel %vm843, %v848, 0.0
        %v852 = vsel %vm844, %v850, 0.0
        %v853 = vadd.f32 %v797, %v851
        %v854 = vadd.f32 %v798, %v852
        %v855 = vadd.f32 %v799, %v848
        %v856 = vadd.f32 %v800, %v850
        %v857 = vpack.c.bf16 %v854, %v853
        %v859 = vsel %vm690, %v857, 0
        %vm861 = vcmask 1043456
        %v863 = vsel %vm861, %v507, 0
        %865 = vmatprep.subr.bf16.mxu0 0
        %866 = vmatpush1.bf16.msra.mxu0 %v863
        %867 = vmatprep.subr.bf16.mxu0 0
        %868 = vmatpush1.bf16.msra.mxu0 0
        %869 = vmatprep.subr.bf16.mxu0 0
        %870 = vmatpush1.bf16.msra.mxu0 0
        %871 = vmatprep.subr.bf16.mxu0 0
        %872 = vmatpush1.bf16.msra.mxu0 0
        %873 = vmatprep.subr.bf16.mxu0 0
        %874 = vmatpush1.bf16.msra.mxu0 0
        %875 = vmatprep.subr.bf16.mxu0 0
        %876 = vmatpush1.bf16.msra.mxu0 0
        %877 = vmatprep.subr.bf16.mxu0 0
        %878 = vmatpush1.bf16.msra.mxu0 0
        %879 = vmatprep.subr.bf16.mxu0 0
        %880 = vmatpush1.bf16.msra.mxu0 0
        %881 = vmatprep.subr.bf16.mxu0 0
        %882 = vmatpush1.bf16.msra.mxu0 0
        %883 = vmatprep.subr.bf16.mxu0 0
        %884 = vmatpush1.bf16.msra.mxu0 0
        %885 = vmatprep.subr.bf16.mxu0 0
        %886 = vmatpush1.bf16.msra.mxu0 0
        %887 = vmatprep.subr.bf16.mxu0 0
        %888 = vmatpush1.bf16.msra.mxu0 0
        %889 = vmatprep.subr.bf16.mxu0 0
        %890 = vmatpush1.bf16.msra.mxu0 0
        %891 = vmatprep.subr.bf16.mxu0 0
        %892 = vmatpush1.bf16.msra.mxu0 0
        %893 = vmatprep.subr.bf16.mxu0 0
        %894 = vmatpush1.bf16.msra.mxu0 0
        %895 = vmatprep.subr.bf16.mxu0 0
        %896 = vmatpush1.bf16.msra.mxu0 0
        %897 = vmatprep.mubr.bf16.mxu0 0
        %898 = vmatmul.mubr.bf16.gmra.mrb[0].mxu0 %v859
        %v899 = vpop.f32.mrb[0].mxu0
        %v900 = vadd.f32 0.0, %v899
        %v901 = vpop.f32.mrb[0].mxu0
        %v902 = vpop.f32.mrb[0].mxu0
        %v903 = vadd.f32 0.0, %v902
        %v904 = vpop.f32.mrb[0].mxu0
        %905 = vdwg.mxu0
        %v906 = vrcp.pop %v855
        %v907 = vrcp.pop %v856
        %v908 = vmul.f32 %v900, %v906
        %v909 = vmul.f32 %v903, %v907
        %v910 = vld [vmem:[%s4] sm:$0xf]
        %v911 = vpack.c.bf16 %v909, %v908
        %v912 = vld [vmem:[%s5] sm:$0xf]
        %v914 = vsel %vm690, %v911, 0
        %v917 = vsel %vm861, %v912, 0
        %919 = vmatprep.subr.bf16.mxu0 0
        %920 = vmatpush1.bf16.msra.mxu0 %v917
        %921 = vmatprep.subr.bf16.mxu0 0
        %922 = vmatpush1.bf16.msra.mxu0 0
        %923 = vmatprep.subr.bf16.mxu0 0
        %924 = vmatpush1.bf16.msra.mxu0 0
        %925 = vmatprep.subr.bf16.mxu0 0
        %926 = vmatpush1.bf16.msra.mxu0 0
        %927 = vmatprep.subr.bf16.mxu0 0
        %928 = vmatpush1.bf16.msra.mxu0 0
        %929 = vmatprep.subr.bf16.mxu0 0
        %930 = vmatpush1.bf16.msra.mxu0 0
        %931 = vmatprep.subr.bf16.mxu0 0
        %932 = vmatpush1.bf16.msra.mxu0 0
        %933 = vmatprep.subr.bf16.mxu0 0
        %934 = vmatpush1.bf16.msra.mxu0 0
        %935 = vmatprep.subr.bf16.mxu0 0
        %936 = vmatpush1.bf16.msra.mxu0 0
        %937 = vmatprep.subr.bf16.mxu0 0
        %938 = vmatpush1.bf16.msra.mxu0 0
        %939 = vmatprep.subr.bf16.mxu0 0
        %940 = vmatpush1.bf16.msra.mxu0 0
        %941 = vmatprep.subr.bf16.mxu0 0
        %942 = vmatpush1.bf16.msra.mxu0 0
        %943 = vmatprep.subr.bf16.mxu0 0
        %944 = vmatpush1.bf16.msra.mxu0 0
        %945 = vmatprep.subr.bf16.mxu0 0
        %946 = vmatpush1.bf16.msra.mxu0 0
        %947 = vmatprep.subr.bf16.mxu0 0
        %948 = vmatpush1.bf16.msra.mxu0 0
        %949 = vmatprep.subr.bf16.mxu0 0
        %950 = vmatpush1.bf16.msra.mxu0 0
        %951 = vmatprep.mubr.bf16.mxu0 0
        %952 = vmatmul.mubr.bf16.gmra.mrb[0].mxu0 %v914
        %v953 = vpop.f32.mrb[0].mxu0
        %v954 = vadd.f32 0.0, %v953
        %v955 = vpop.f32.mrb[0].mxu0
        %v956 = vpop.f32.mrb[0].mxu0
        %v957 = vadd.f32 0.0, %v956
        %v958 = vpop.f32.mrb[0].mxu0
        %959 = vdwg.mxu0
        %v962 = vunpack.c.l.b16 %v505
        %v963 = vunpack.c.l.b16 %v506
        %v964 = vpack.c.b16 %v963, %v962
        %v966 = vsel %vm690, %v964, 0
        %v969 = vsel %vm861, %v910, 0
        %971 = vmatprep.subr.bf16.mxu0 0
        %972 = vmatpush1.bf16.msra.mxu0 %v969
        %973 = vmatprep.subr.bf16.mxu0 0
        %974 = vmatpush1.bf16.msra.mxu0 0
        %975 = vmatprep.subr.bf16.mxu0 0
        %976 = vmatpush1.bf16.msra.mxu0 0
        %977 = vmatprep.subr.bf16.mxu0 0
        %978 = vmatpush1.bf16.msra.mxu0 0
        %979 = vmatprep.subr.bf16.mxu0 0
        %980 = vmatpush1.bf16.msra.mxu0 0
        %981 = vmatprep.subr.bf16.mxu0 0
        %982 = vmatpush1.bf16.msra.mxu0 0
        %983 = vmatprep.subr.bf16.mxu0 0
        %984 = vmatpush1.bf16.msra.mxu0 0
        %985 = vmatprep.subr.bf16.mxu0 0
        %986 = vmatpush1.bf16.msra.mxu0 0
        %987 = vmatprep.subr.bf16.mxu0 0
        %988 = vmatpush1.bf16.msra.mxu0 0
        %989 = vmatprep.subr.bf16.mxu0 0
        %990 = vmatpush1.bf16.msra.mxu0 0
        %991 = vmatprep.subr.bf16.mxu0 0
        %992 = vmatpush1.bf16.msra.mxu0 0
        %993 = vmatprep.subr.bf16.mxu0 0
        %994 = vmatpush1.bf16.msra.mxu0 0
        %995 = vmatprep.subr.bf16.mxu0 0
        %996 = vmatpush1.bf16.msra.mxu0 0
        %997 = vmatprep.subr.bf16.mxu0 0
        %998 = vmatpush1.bf16.msra.mxu0 0
        %999 = vmatprep.subr.bf16.mxu0 0
        %1000 = vmatpush1.bf16.msra.mxu0 0
        %1001 = vmatprep.subr.bf16.mxu0 0
        %1002 = vmatpush1.bf16.msra.mxu0 0
        %1003 = vmatprep.mubr.bf16.mxu0 0
        %1004 = vmatmul.mubr.bf16.gmra.mrb[0].mxu0 %v966
        %v1005 = vpop.f32.mrb[0].mxu0
        %v1006 = vadd.f32 %v954, %v1005
        %v1007 = vpop.f32.mrb[0].mxu0
        %v1008 = vpop.f32.mrb[0].mxu0
        %v1009 = vadd.f32 %v957, %v1008
        %v1010 = vpop.f32.mrb[0].mxu0
        %1011 = vdwg.mxu0
        %v1012 = vld [vmem:[%s6] sm:$0x1]
        %v1014 = vlaneseq
        %v1015 = vshrl.u32 %v1014, 7
        %v1016 = vsub.s32 0, %v1015
        %v1017 = vrot.slane %v1012, %v1016
        %v1019 = vadd.f32 %v1006, %v1017
        %v1020 = vadd.f32 %v1009, %v1017
        %v1021 = vmul.f32 %v1019, 0.5
        %v1022 = vmul.f32 %v1020, 0.5
        %v1023 = vmul.f32 %v1019, %v1019
        %v1024 = vmul.f32 %v1020, %v1020
        %v1025 = vmul.f32 %v1023, %v1019
        %v1026 = vmul.f32 %v1024, %v1020
        %v1027 = vmul.f32 %v1025, 0.044715
        %v1028 = vmul.f32 %v1026, 0.044715
        %v1029 = vadd.f32 %v1019, %v1027
        %v1030 = vadd.f32 %v1020, %v1028
        %v1031 = vmul.f32 %v1029, 0.7978846
        %v1032 = vmul.f32 %v1030, 0.7978846
        %v1033 = vtanh.pop %v1031
        %v1034 = vtanh.pop %v1032
        %v1035 = vadd.f32 %v1033, 1.0
        %v1036 = vadd.f32 %v1034, 1.0
        %v1037 = vmul.f32 %v1021, %v1035
        %v1038 = vmul.f32 %v1022, %v1036
        %v1039 = vpack.c.bf16 %v1038, %v1037
        %v1040 = vld [vmem:[%s7] sm:$0xf]
        %v1041 = vld [vmem:[%s7 + $0x4] sm:$0xf]
        %v1042 = vld [vmem:[%s7 + $0x8] sm:$0xf]
        %v1043 = vld [vmem:[%s7 + $0xc] sm:$0xf]
        %v1044 = vld [vmem:[%s7 + $0x10] sm:$0xf]
        %v1045 = vld [vmem:[%s7 + $0x14] sm:$0xf]
        %v1046 = vld [vmem:[%s7 + $0x18] sm:$0xf]
        %v1047 = vld [vmem:[%s7 + $0x1c] sm:$0xf]
        %v1048 = vld [vmem:[%s7 + $0x20] sm:$0xf]
        %v1049 = vld [vmem:[%s7 + $0x24] sm:$0xf]
        %v1050 = vld [vmem:[%s7 + $0x28] sm:$0xf]
        %v1051 = vld [vmem:[%s7 + $0x2c] sm:$0xf]
        %v1052 = vld [vmem:[%s7 + $0x30] sm:$0xf]
        %v1053 = vld [vmem:[%s7 + $0x34] sm:$0xf]
        %v1054 = vld [vmem:[%s7 + $0x38] sm:$0xf]
        %v1055 = vld [vmem:[%s7 + $0x3c] sm:$0xf]
        %v1056 = vld [vmem:[%s8] sm:$0x1]
        %v1058 = vlaneseq
        %v1059 = vshrl.u32 %v1058, 7
        %v1060 = vsub.s32 0, %v1059
        %v1061 = vrot.slane %v1056, %v1060
        %v1079 = vunpack.c.l.b16 %v1040
        %v1080 = vunpack.c.l.b16 %v1041
        %v1081 = vunpack.c.l.b16 %v1042
        %v1082 = vunpack.c.l.b16 %v1043
        %v1083 = vunpack.c.l.b16 %v1044
        %v1084 = vunpack.c.l.b16 %v1045
        %v1085 = vunpack.c.l.b16 %v1046
        %v1086 = vunpack.c.l.b16 %v1047
        %v1087 = vunpack.c.l.b16 %v1048
        %v1088 = vunpack.c.l.b16 %v1049
        %v1089 = vunpack.c.l.b16 %v1050
        %v1090 = vunpack.c.l.b16 %v1051
        %v1091 = vunpack.c.l.b16 %v1052
        %v1092 = vunpack.c.l.b16 %v1053
        %v1093 = vunpack.c.l.b16 %v1054
        %v1094 = vunpack.c.l.b16 %v1055
        %v1095 = vpack.c.b16 %v1080, %v1079
        %v1096 = vpack.c.b16 %v1082, %v1081
        %v1097 = vpack.c.b16 %v1084, %v1083
        %v1098 = vpack.c.b16 %v1086, %v1085
        %v1099 = vpack.c.b16 %v1088, %v1087
        %v1100 = vpack.c.b16 %v1090, %v1089
        %v1101 = vpack.c.b16 %v1092, %v1091
        %v1102 = vpack.c.b16 %v1094, %v1093
        %1111 = vmatprep.subr.bf16.mxu0 0
        %1112 = vmatpush1.bf16.msra.mxu0 %v1095
        %1113 = vmatprep.subr.bf16.mxu0 0
        %1114 = vmatpush1.bf16.msra.mxu0 %v1096
        %1115 = vmatprep.subr.bf16.mxu0 0
        %1116 = vmatpush1.bf16.msra.mxu0 %v1097
        %1117 = vmatprep.subr.bf16.mxu0 0
        %1118 = vmatpush1.bf16.msra.mxu0 %v1098
        %1119 = vmatprep.subr.bf16.mxu0 0
        %1120 = vmatpush1.bf16.msra.mxu0 %v1099
        %1121 = vmatprep.subr.bf16.mxu0 0
        %1122 = vmatpush1.bf16.msra.mxu0 %v1100
        %1123 = vmatprep.subr.bf16.mxu0 0
        %1124 = vmatpush1.bf16.msra.mxu0 %v1101
        %1125 = vmatprep.subr.bf16.mxu0 0
        %1126 = vmatpush1.bf16.msra.mxu0 %v1102
        %1127 = vmatprep.subr.bf16.mxu0 0
        %1128 = vmatpush1.bf16.msra.mxu0 0
        %1129 = vmatprep.subr.bf16.mxu0 0
        %1130 = vmatpush1.bf16.msra.mxu0 0
        %1131 = vmatprep.subr.bf16.mxu0 0
        %1132 = vmatpush1.bf16.msra.mxu0 0
        %1133 = vmatprep.subr.bf16.mxu0 0
        %1134 = vmatpush1.bf16.msra.mxu0 0
        %1135 = vmatprep.subr.bf16.mxu0 0
        %1136 = vmatpush1.bf16.msra.mxu0 0
        %1137 = vmatprep.subr.bf16.mxu0 0
        %1138 = vmatpush1.bf16.msra.mxu0 0
        %1139 = vmatprep.subr.bf16.mxu0 0
        %1140 = vmatpush1.bf16.msra.mxu0 0
        %1141 = vmatprep.subr.bf16.mxu0 0
        %1142 = vmatpush1.bf16.msra.mxu0 0
        %1143 = vmatprep.mubr.bf16.mxu0 0
        %1144 = vmatmul.mubr.bf16.gmra.mrb[0].mxu0 %v1039
        %v1145 = vpop.f32.mrb[0].mxu0
        %v1146 = vadd.f32 %v1061, %v1145
        %v1147 = vpop.f32.mrb[0].mxu0
        %v1148 = vpop.f32.mrb[0].mxu0
        %v1149 = vadd.f32 %v1061, %v1148
        %v1150 = vpop.f32.mrb[0].mxu0
        %1151 = vdwg.mxu0
        %v1152 = vmul.f32 %v1146, 0.5
        %v1153 = vmul.f32 %v1149, 0.5
        %v1154 = vmul.f32 %v1146, %v1146
        %v1155 = vmul.f32 %v1149, %v1149
        %v1156 = vmul.f32 %v1154, %v1146
        %v1157 = vmul.f32 %v1155, %v1149
        %v1158 = vmul.f32 %v1156, 0.044715
        %v1159 = vmul.f32 %v1157, 0.044715
        %v1160 = vadd.f32 %v1146, %v1158
        %v1161 = vadd.f32 %v1149, %v1159
        %v1162 = vmul.f32 %v1160, 0.7978846
        %v1163 = vmul.f32 %v1161, 0.7978846
        %v1164 = vtanh.pop %v1162
        %v1165 = vtanh.pop %v1163
        %v1166 = vadd.f32 %v1164, 1.0
        %v1167 = vadd.f32 %v1165, 1.0
        %v1168 = vmul.f32 %v1152, %v1166
        %v1169 = vmul.f32 %v1153, %v1167
        %v1170 = vpack.c.bf16 %v1169, %v1168
        %v1171 = vld [vmem:[#allocation2] sm:$0xf]
        %v1172 = vld [vmem:[#allocation2 + $0x4] sm:$0xf]
        %v1173 = vld [vmem:[#allocation2 + $0x8] sm:$0xf]
        %v1174 = vld [vmem:[#allocation2 + $0xc] sm:$0xf]
        %v1175 = vld [vmem:[#allocation2 + $0x10] sm:$0xf]
        %v1176 = vld [vmem:[#allocation2 + $0x14] sm:$0xf]
        %v1177 = vld [vmem:[#allocation2 + $0x18] sm:$0xf]
        %v1178 = vld [vmem:[#allocation2 + $0x1c] sm:$0xf]
        %v1179 = vld [vmem:[#allocation2 + $0x20] sm:$0xf]
        %v1180 = vld [vmem:[#allocation2 + $0x24] sm:$0xf]
        %v1181 = vld [vmem:[#allocation2 + $0x28] sm:$0xf]
        %v1182 = vld [vmem:[#allocation2 + $0x2c] sm:$0xf]
        %v1183 = vld [vmem:[#allocation2 + $0x30] sm:$0xf]
        %v1184 = vld [vmem:[#allocation2 + $0x34] sm:$0xf]
        %v1185 = vld [vmem:[#allocation2 + $0x38] sm:$0xf]
        %v1186 = vld [vmem:[#allocation2 + $0x3c] sm:$0xf]
        %v1187 = vld [vmem:[%s10] sm:$0x1]
        %v1189 = vlaneseq
        %v1190 = vshrl.u32 %v1189, 7
        %v1191 = vsub.s32 0, %v1190
        %v1192 = vrot.slane %v1187, %v1191
        %v1210 = vunpack.c.l.b16 %v1171
        %v1211 = vunpack.c.l.b16 %v1172
        %v1212 = vunpack.c.l.b16 %v1173
        %v1213 = vunpack.c.l.b16 %v1174
        %v1214 = vunpack.c.l.b16 %v1175
        %v1215 = vunpack.c.l.b16 %v1176
        %v1216 = vunpack.c.l.b16 %v1177
        %v1217 = vunpack.c.l.b16 %v1178
        %v1218 = vunpack.c.l.b16 %v1179
        %v1219 = vunpack.c.l.b16 %v1180
        %v1220 = vunpack.c.l.b16 %v1181
        %v1221 = vunpack.c.l.b16 %v1182
        %v1222 = vunpack.c.l.b16 %v1183
        %v1223 = vunpack.c.l.b16 %v1184
        %v1224 = vunpack.c.l.b16 %v1185
        %v1225 = vunpack.c.l.b16 %v1186
        %v1226 = vpack.c.b16 %v1211, %v1210
        %v1227 = vpack.c.b16 %v1213, %v1212
        %v1228 = vpack.c.b16 %v1215, %v1214
        %v1229 = vpack.c.b16 %v1217, %v1216
        %v1230 = vpack.c.b16 %v1219, %v1218
        %v1231 = vpack.c.b16 %v1221, %v1220
        %v1232 = vpack.c.b16 %v1223, %v1222
        %v1233 = vpack.c.b16 %v1225, %v1224
        %1242 = vmatprep.subr.bf16.mxu0 0
        %1243 = vmatpush1.bf16.msra.mxu0 %v1226
        %1244 = vmatprep.subr.bf16.mxu0 0
        %1245 = vmatpush1.bf16.msra.mxu0 %v1227
        %1246 = vmatprep.subr.bf16.mxu0 0
        %1247 = vmatpush1.bf16.msra.mxu0 %v1228
        %1248 = vmatprep.subr.bf16.mxu0 0
        %1249 = vmatpush1.bf16.msra.mxu0 %v1229
        %1250 = vmatprep.subr.bf16.mxu0 0
        %1251 = vmatpush1.bf16.msra.mxu0 %v1230
        %1252 = vmatprep.subr.bf16.mxu0 0
        %1253 = vmatpush1.bf16.msra.mxu0 %v1231
        %1254 = vmatprep.subr.bf16.mxu0 0
        %1255 = vmatpush1.bf16.msra.mxu0 %v1232
        %1256 = vmatprep.subr.bf16.mxu0 0
        %1257 = vmatpush1.bf16.msra.mxu0 %v1233
        %1258 = vmatprep.subr.bf16.mxu0 0
        %1259 = vmatpush1.bf16.msra.mxu0 0
        %1260 = vmatprep.subr.bf16.mxu0 0
        %1261 = vmatpush1.bf16.msra.mxu0 0
        %1262 = vmatprep.subr.bf16.mxu0 0
        %1263 = vmatpush1.bf16.msra.mxu0 0
        %1264 = vmatprep.subr.bf16.mxu0 0
        %1265 = vmatpush1.bf16.msra.mxu0 0
        %1266 = vmatprep.subr.bf16.mxu0 0
        %1267 = vmatpush1.bf16.msra.mxu0 0
        %1268 = vmatprep.subr.bf16.mxu0 0
        %1269 = vmatpush1.bf16.msra.mxu0 0
        %1270 = vmatprep.subr.bf16.mxu0 0
        %1271 = vmatpush1.bf16.msra.mxu0 0
        %1272 = vmatprep.subr.bf16.mxu0 0
        %1273 = vmatpush1.bf16.msra.mxu0 0
        %1274 = vmatprep.mubr.bf16.mxu0 0
        %1275 = vmatmul.mubr.bf16.gmra.mrb[0].mxu0 %v1170
        %v1276 = vpop.f32.mrb[0].mxu0
        %v1277 = vadd.f32 %v1192, %v1276
        %v1278 = vpop.f32.mrb[0].mxu0
        %v1279 = vpop.f32.mrb[0].mxu0
        %v1280 = vadd.f32 %v1192, %v1279
        %v1281 = vpop.f32.mrb[0].mxu0
        %1282 = vdwg.mxu0
        %v1283 = vadd.f32 %v1277, %v1037
        %v1284 = vadd.f32 %v1280, %v1038
        %v1285 = vmul.f32 %v1283, 0.5
        %v1286 = vmul.f32 %v1284, 0.5
        %v1287 = vmul.f32 %v1283, %v1283
        %v1288 = vmul.f32 %v1284, %v1284
        %v1289 = vmul.f32 %v1287, %v1283
        %v1290 = vmul.f32 %v1288, %v1284
        %v1291 = vmul.f32 %v1289, 0.044715
        %v1292 = vmul.f32 %v1290, 0.044715
        %v1293 = vadd.f32 %v1283, %v1291
        %v1294 = vadd.f32 %v1284, %v1292
        %v1295 = vmul.f32 %v1293, 0.7978846
        %v1296 = vmul.f32 %v1294, 0.7978846
        %v1297 = vtanh.pop %v1295
        %v1298 = vtanh.pop %v1296
        %v1299 = vadd.f32 %v1297, 1.0
        %v1300 = vadd.f32 %v1298, 1.0
        %v1301 = vmul.f32 %v1285, %v1299
        %v1302 = vmul.f32 %v1286, %v1300
        %1303 = vst [vmem:[%s471] sm:$0xff] %v1301
        %1304 = vst [vmem:[%s471 + $0x8] sm:$0xff] %v1302
        %s1305 = sand.u32 %s303, 1
        %s1306 = scalar_lea.sflag [#allocation4], %s1305
        %s1307 = sand.u32 %s303, 1
        %s1308 = smul.addr %s1307, 16
        %s1309 = scalar_lea.vmem [#allocation5], %s1308
        // Predicated region
        $region69: #{tpu_custom_call.1} parent=63 // pred_check
          %p1310 = pneg %p313
        $region70: #{tpu_custom_call.1} parent=63 // pred_check_branch
          %1312 = sbr.rel (%p1310) target = $region72
        $region71: #{tpu_custom_call.1} parent=63 // pred_region
          %s1313 = smul.u32 2, %s31
          %s1315 = ssub.s32 256, 256
          %1316 = vsyncadd %s1306, %s1315
          %s1317 = smul.addr %s30, 2
          %s1318 = sadd.s32 %s1313, %s1317
          %s1319 = smul.addr %s1318, 128
          %s1320 = scalar_lea.hbm %s11, %s1319
          %s1321 = sshll.u32 %s1309, 4
          %s1322 = int_to_ptr.vmem [resolvable:$true] %s1321
          %1327 = dma.vmem_to_hbm [thread:$0]  %s1322, 256, %s1320, %s1306, 128, 128, 8
        $region72: #{tpu_custom_call.1} parent=63 // pred_fallthru
          _
      $region64: #{tpu_custom_call.1} parent=5 // pred_fallthru
        _
      %p1328 = scmp.le.s32.totalorder 2, %s21
      // Predicated region
      $region73: #{tpu_custom_call.1} parent=5 // pred_check
        %p1329 = pneg %p1328
      $region74: #{tpu_custom_call.1} parent=5 // pred_check_branch
        %1331 = sbr.rel (%p1329) target = $region76
      $region75: #{tpu_custom_call.1} parent=5 // pred_region
        %s1332 = ssub.s32 %s21, 2
        // Predicated region
        $region77: #{tpu_custom_call.1} parent=75 // pred_check
          %p1333 = pneg %p319
        $region78: #{tpu_custom_call.1} parent=75 // pred_check_branch
          %1335 = sbr.rel (%p1333) target = $region80
        $region79: #{tpu_custom_call.1} parent=75 // pred_region
          %s1336 = sand.u32 %s304, 1
          %s1337 = scalar_lea.sflag [#allocation4], %s1336
          %s1338 = sand.u32 %s304, 1
          %s1339 = smul.addr %s1338, 16
          %s1340 = scalar_lea.vmem [#allocation5], %s1339
          %1341 = dma.done %s1337, 256
        $region80: #{tpu_custom_call.1} parent=75 // pred_fallthru
          _
      $region76: #{tpu_custom_call.1} parent=5 // pred_fallthru
        _
    $region6: #{tpu_custom_call.1} parent=1 // loop_footer
      %s25 = sadd.s32 1, %s21
    $region7: #{tpu_custom_call.1} parent=1 // loop_footer_branch
      %20 = sbr.rel target = $region3
    $region8: #{tpu_custom_call.1} parent=1 // loop_exit
      _
    %1342 = vsyncpa [#allocation3], 1
    %s1343 = scalar_lea.sflag [#allocation3], 1
    %1344 = vsyncpa %s1343, 1
    %1345 = vsyncpa [#allocation4], 1
    %s1346 = scalar_lea.sflag [#allocation4], 1
    %1347 = vsyncpa %s1346, 1

</llo_original>
